<compile_context>
chip_gen: v6e
topology: v6e:2x2x1
jax: 0.10.0
libtpu: 0.0.40
codegen_flags: <defaults>
</compile_context>

<pallas_src>
import jax
import jax.numpy as jnp
from jax.experimental import pallas as pl
from jax.experimental.pallas import tpu as pltpu

N_FEATURES = 512     # n_features of the head
N_CLASSES = 10       # data.c for MNIST
D_MID = 128          # hidden width of the first linear
LANE = 128           # TPU lane width (output padding target)
BN_EPS = 1e-5
NORM_EPS = 1e-12     # F.normalize default eps


# --------------------------------------------------------------------------- #
# Kernel
# --------------------------------------------------------------------------- #
def arc_head_kernel(x_ref, w1m_ref, w1a_ref, b1_ref, w2_ref, b2_ref, w3_ref,
                    out_ref):
    # x_ref: [tb, H*W, C] bf16, channels-last (C on the lane axis).
    tb, hw, _ = x_ref.shape
    chunk = min(8, hw)   # sublane-aligned pooling chunks

    # AdaptiveConcatPool2d fused into ONE pass over the bf16 block: each chunk is
    # cast to f32 once and feeds both reductions; only [tb, C] f32 running
    # max/sum accumulators persist (no full-block f32 temp).  f32 pooling also
    # keeps the lowering identical on v5e (no bf16 VPU there).
    mx = None
    sm = None
    s = 0
    while s < hw:
        c = min(chunk, hw - s)
        blk = x_ref[:, s:s + c, :].astype(jnp.float32)   # [tb, c, C], chunk-scoped
        cmx = jnp.max(blk, axis=1)
        csm = jnp.sum(blk, axis=1)
        if mx is None:
            mx, sm = cmx, csm
        else:
            mx = jnp.maximum(mx, cmx)
            sm = sm + csm
        s += c

    # Linear(1024, 128) with BN1 folded.  The 1/(H*W) of the average pool is
    # folded into w1a, so the spatial *sum* feeds it directly.  concat([max|avg])
    # is expressed as two MXU calls on the W1 halves, accumulated in f32
    # (merging into one K=1024 matmul isn't worth the concat copy: HBM-bound).
    h = (jnp.dot(mx.astype(jnp.bfloat16), w1m_ref[...],
                 preferred_element_type=jnp.float32)
         + jnp.dot(sm.astype(jnp.bfloat16), w1a_ref[...],
                   preferred_element_type=jnp.float32)
         + b1_ref[...])
    h = jnp.maximum(h, 0.0)                      # ReLU; Dropout == identity (eval)

    # Linear(128, 512) with BN2 (pre) and BN3 (post) folded.
    h = jnp.dot(h.astype(jnp.bfloat16), w2_ref[...],
                preferred_element_type=jnp.float32) + b2_ref[...]

    # F.normalize(x, dim=1): x / max(||x||_2, eps), via rsqrt on the EUP slot.
    sumsq = jnp.sum(h * h, axis=1, keepdims=True)
    h = h * jax.lax.rsqrt(jnp.maximum(sumsq, NORM_EPS * NORM_EPS))

    # Final Linear(n_features, n_classes, bias=False) on the pre-normalized,
    # zero-padded (lane-dense, 128-wide) classifier weight.
    out_ref[...] = jnp.dot(h.astype(jnp.bfloat16), w3_ref[...],
                           preferred_element_type=jnp.float32)


# --------------------------------------------------------------------------- #
# Parameter folding (eval mode)
# --------------------------------------------------------------------------- #
def _bn_scale_shift(gamma, beta, mean, var, eps=BN_EPS):
    scale = gamma / jnp.sqrt(var + eps)
    shift = beta - mean * scale
    return scale.astype(jnp.float32), shift.astype(jnp.float32)


def _fold_params(params, hw):
    """Fold BN1/BN2/BN3 into the linears, 1/(H*W) into the avg-pool half of W1,
    and pre-normalize + lane-pad the classifier weight."""
    s1, t1 = _bn_scale_shift(*params["bn1"])
    s2, t2 = _bn_scale_shift(*params["bn2"])
    s3, t3 = _bn_scale_shift(*params["bn3"])

    w1 = params["w1"].astype(jnp.float32)      # [1024, 128]
    b1 = params["b1"].astype(jnp.float32)
    w2 = params["w2"].astype(jnp.float32)      # [128, 512]
    b2 = params["b2"].astype(jnp.float32)
    w3t = params["w3t"].astype(jnp.float32)    # [512, n_classes]

    # BN1 then Linear1:  (feat*s1 + t1) @ w1 + b1  ==  feat @ (s1[:,None]*w1) + (t1@w1 + b1)
    w1f = w1 * s1[:, None]
    b1f = t1 @ w1 + b1
    c = w1.shape[0] // 2
    w1_max = w1f[:c]
    w1_avg = w1f[c:] * (1.0 / hw)              # kernel feeds the spatial SUM

    # BN2 then Linear2 then BN3:
    #   ((h*s2 + t2) @ w2 + b2)*s3 + t3  ==  h @ (s2[:,None]*w2*s3[None,:]) + ((t2@w2 + b2)*s3 + t3)
    w2f = (w2 * s2[:, None]) * s3[None, :]
    b2f = (t2 @ w2 + b2) * s3 + t3

    # weight.div_(weight.norm(dim=0)): W is [n_classes, 512]; norm(dim=0) == row
    # norms of W.T (per-feature norms over classes, exactly as the spec states).
    # Normalize once here (input-independent), then zero-pad to a lane-dense
    # width so the kernel's store is an unmasked 128-wide slab.
    w3n = w3t / jnp.linalg.norm(w3t, axis=1, keepdims=True)
    n_classes = w3t.shape[1]
    pad = (-n_classes) % LANE
    w3p = jnp.pad(w3n, ((0, 0), (0, pad)))

    return dict(
        w1_max=w1_max.astype(jnp.bfloat16),
        w1_avg=w1_avg.astype(jnp.bfloat16),
        b1=b1f[None, :],                        # [1, 128]  f32
        w2=w2f.astype(jnp.bfloat16),
        b2=b2f[None, :],                        # [1, 512]  f32
        w3=w3p.astype(jnp.bfloat16),            # [512, 128] (zero-padded)
        n_classes=n_classes,
    )


# --------------------------------------------------------------------------- #
# Sizing helpers (per-generation tuning)
# --------------------------------------------------------------------------- #
def _vmem_capacity_bytes():
    try:
        return int(pltpu.get_tpu_info().vmem_capacity_bytes)
    except Exception:
        return 64 * 1024 * 1024   # conservative (v7x-class per-core VMEM)


def _pick_batch_block(B, hw, C, vmem_cap):
    # Double-buffered bf16 x blocks take at most min(vmem/4, 16 MiB): this keeps
    # 2 x-buffers + resident weights + chunk temps + out slab well under half of
    # v7x's 64 MiB per-TC VMEM (tb=512 for 4x4 feature maps, auto-smaller for
    # larger hw), while a multi-MiB block already amortizes the ~0.35us/step
    # grid overhead on every generation.
    x_budget = min(vmem_cap // 4, 16 * 1024 * 1024)
    tb = x_budget // (2 * hw * C * 2)          # 2 buffers x bf16 (2 B/elem)
    tb = max(8, min(1024, (tb // 8) * 8))
    return min(tb, B)


def _vmem_limit_bytes(tb, hw, C, d_mid, n_feat, n_out, vmem_cap):
    chunk = min(8, hw)
    est = (2 * tb * hw * C * 2                                   # x double buffer (bf16)
           + 2 * tb * n_out * 4                                  # out double buffer (f32)
           + 2 * 2 * (C * d_mid + d_mid * n_feat + n_feat * n_out)  # weights (bf16, 2 bufs)
           + tb * chunk * C * 4                                  # per-chunk f32 pooling temp
           + tb * (2 * C + d_mid + n_feat + n_out) * 4)          # activations / accumulators
    limit = int(est * 1.5) + (8 << 20)
    limit = max(32 << 20, min(limit, (vmem_cap // 4) * 3))       # keep physical headroom
    return int(limit)


# --------------------------------------------------------------------------- #
# Wrappers
# --------------------------------------------------------------------------- #
def nchw_to_channels_last(x_nchw, dtype=jnp.bfloat16):
    """PyTorch-NCHW compatibility shim.

    This transpose is a full extra HBM round trip (read 4B + write 2B per
    element) on top of the kernel's own read.  In a real pipeline the backbone
    should emit channels-last bf16 activations (or fuse this into its epilogue)
    and call arc_head_forward directly.
    """
    B, C, H, W = x_nchw.shape
    return jnp.transpose(x_nchw.reshape(B, C, H * W), (0, 2, 1)).astype(dtype)


def arc_head_forward(x, params, *, batch_block=None, core_parallel=False):
    """ArcHead forward (eval mode).

    x: channels-last activations, [B, H, W, C] or [B, H*W, C]; bf16 preferred.
    Returns [B, n_classes] float32 logits.
    """
    if x.ndim == 4:
        B, H, W, C = x.shape
        x = x.reshape(B, H * W, C)              # free reshape (contiguous)
    B, hw, C = x.shape
    if x.dtype != jnp.bfloat16:
        x = x.astype(jnp.bfloat16)
    assert 2 * C == params["w1"].shape[0], "head expects 2*C input features"

    fp = _fold_params(params, hw)
    n_classes = fp["n_classes"]
    n_out = fp["w3"].shape[1]                   # padded, lane-dense output width
    d_mid = fp["w1_max"].shape[1]
    n_feat = fp["w2"].shape[1]

    vmem_cap = _vmem_capacity_bytes()
    tb = batch_block if batch_block is not None else _pick_batch_block(B, hw, C, vmem_cap)
    tb = max(1, min(tb, B))
    grid = (pl.cdiv(B, tb),)
    const2 = lambda i: (0, 0)

    # TODO(synk): on v7x, confirm the batch grid shards across both TensorCores;
    # if plain "parallel" keeps it on one TC, call with core_parallel=True.
    dim_sem = (pltpu.CORE_PARALLEL,) if core_parallel else ("parallel",)

    out = pl.pallas_call(
        arc_head_kernel,
        out_shape=jax.ShapeDtypeStruct((B, n_out), jnp.float32),
        grid_spec=pltpu.PrefetchScalarGridSpec(
            num_scalar_prefetch=0,
            grid=grid,
            in_specs=[
                pl.BlockSpec((tb, hw, C), lambda i: (i, 0, 0)),   # streamed x
                pl.BlockSpec((C, d_mid), const2),                 # W1 max half (BN1 folded)
                pl.BlockSpec((C, d_mid), const2),                 # W1 avg half (BN1 + 1/hw folded)
                pl.BlockSpec((1, d_mid), const2),                 # b1
                pl.BlockSpec((d_mid, n_feat), const2),            # W2 (BN2/BN3 folded)
                pl.BlockSpec((1, n_feat), const2),                # b2
                pl.BlockSpec((n_feat, n_out), const2),            # normalized, padded W3^T
            ],
            out_specs=pl.BlockSpec((tb, n_out), lambda i: (i, 0)),
        ),
        compiler_params=pltpu.CompilerParams(
            dimension_semantics=dim_sem,
            vmem_limit_bytes=_vmem_limit_bytes(tb, hw, C, d_mid, n_feat, n_out,
                                               vmem_cap),
        ),
    )(x, fp["w1_max"], fp["w1_avg"], fp["b1"], fp["w2"], fp["b2"], fp["w3"])

    return out[:, :n_classes]


# --------------------------------------------------------------------------- #
# Pure-jnp reference (mirrors the PyTorch forward, eval mode, f32)
# --------------------------------------------------------------------------- #
def arc_head_reference(x_nchw, params):
    B, C, H, W = x_nchw.shape
    x = x_nchw.reshape(B, C, H * W)
    feat = jnp.concatenate([jnp.max(x, -1), jnp.mean(x, -1)], axis=1)

    def bn(h, p):
        g, b, m, v = p
        return (h - m) / jnp.sqrt(v + BN_EPS) * g + b

    h = bn(feat, params["bn1"])
    h = jnp.maximum(h @ params["w1"] + params["b1"], 0.0)
    h = bn(h, params["bn2"])
    h = h @ params["w2"] + params["b2"]
    h = bn(h, params["bn3"])
    h = h / jnp.maximum(jnp.linalg.norm(h, axis=1, keepdims=True), NORM_EPS)
    w3t = params["w3t"]
    w3t = w3t / jnp.linalg.norm(w3t, axis=1, keepdims=True)
    return h @ w3t


def make_params(key):
    ks = jax.random.split(key, 16)

    def bn_params(k, n):
        k1, k2, k3, k4 = jax.random.split(k, 4)
        gamma = jax.random.uniform(k1, (n,), jnp.float32, 0.5, 1.5)
        beta = 0.1 * jax.random.normal(k2, (n,), jnp.float32)
        mean = 0.1 * jax.random.normal(k3, (n,), jnp.float32)
        var = jax.random.uniform(k4, (n,), jnp.float32, 0.5, 1.5)
        return (gamma, beta, mean, var)

    params = {
        "bn1": bn_params(ks[0], 1024),
        "w1": (jax.random.normal(ks[1], (1024, D_MID), jnp.float32) / jnp.sqrt(1024.0)),
        "b1": 0.01 * jax.random.normal(ks[2], (D_MID,), jnp.float32),
        "bn2": bn_params(ks[3], D_MID),
        "w2": (jax.random.normal(ks[4], (D_MID, N_FEATURES), jnp.float32) / jnp.sqrt(128.0)),
        "b2": 0.01 * jax.random.normal(ks[5], (N_FEATURES,), jnp.float32),
        "bn3": bn_params(ks[6], N_FEATURES),
        # Final Linear(n_features, data.c, bias=False): stored transposed [512, 10].
        "w3t": jax.random.normal(ks[7], (N_FEATURES, N_CLASSES), jnp.float32)
               / jnp.sqrt(float(N_FEATURES)),
    }
    return params


if __name__ == "__main__":
    key = jax.random.PRNGKey(0)
    kx, kp = jax.random.split(key)

    # The head expects 512 input channels (AdaptiveConcatPool2d -> 1024 feats);
    # keep batch/spatial tiny for the demo.
    B, C, H, W = 2, 512, 4, 4
    x_nchw = jax.random.normal(kx, (B, C, H, W), jnp.float32)   # PyTorch-like layout
    params = make_params(kp)

    # Preferred path: channels-last bf16 (what the backbone should emit directly;
    # the shim below stands in for that here and is the only layout op in play).
    x_lanes = nchw_to_channels_last(x_nchw)

    logits = arc_head_forward(x_lanes, params)
    jax.block_until_ready(logits)

    ref = arc_head_reference(x_nchw, params)
    assert logits.shape == (B, N_CLASSES)
    # bf16 x stream + bf16 MXU matmuls (f32 accumulation) vs f32 reference:
    # logits are cosine-similarity-scale values, so a few e-2 tolerance.
    assert jnp.allclose(logits, ref, atol=3e-2, rtol=3e-2), (
        f"max abs diff {jnp.max(jnp.abs(logits - ref))}")

    print("KERNEL_OK")
</pallas_src>

<mosaic_0001>
module attributes {stable_mosaic.version = 11 : i64} {
  func.func @arc_head_kernel(%arg0: i32, %arg1: memref<2x16x512xbf16, #tpu.memory_space<vmem>>, %arg2: memref<512x128xbf16, #tpu.memory_space<vmem>>, %arg3: memref<512x128xbf16, #tpu.memory_space<vmem>>, %arg4: memref<1x128xf32, #tpu.memory_space<vmem>>, %arg5: memref<128x512xbf16, #tpu.memory_space<vmem>>, %arg6: memref<1x512xf32, #tpu.memory_space<vmem>>, %arg7: memref<512x128xbf16, #tpu.memory_space<vmem>>, %arg8: memref<2x128xf32, #tpu.memory_space<vmem>>) attributes {dimension_semantics = [#tpu.dimension_semantics<parallel>], iteration_bounds = array<i64: 1>, scalar_prefetch = 0 : i64, scratch_operands = 0 : i64, tpu.core_type = #tpu.core_type<tc>, window_params = [{transform_indices = @transform_0, window_bounds = array<i64: 2, 16, 512>}, {pipeline_mode = #tpu.pipeline_mode<synchronous>, transform_indices = @transform_1, window_bounds = array<i64: 512, 128>}, {pipeline_mode = #tpu.pipeline_mode<synchronous>, transform_indices = @transform_2, window_bounds = array<i64: 512, 128>}, {pipeline_mode = #tpu.pipeline_mode<synchronous>, transform_indices = @transform_3, window_bounds = array<i64: 1, 128>}, {pipeline_mode = #tpu.pipeline_mode<synchronous>, transform_indices = @transform_4, window_bounds = array<i64: 128, 512>}, {pipeline_mode = #tpu.pipeline_mode<synchronous>, transform_indices = @transform_5, window_bounds = array<i64: 1, 512>}, {pipeline_mode = #tpu.pipeline_mode<synchronous>, transform_indices = @transform_6, window_bounds = array<i64: 512, 128>}, {transform_indices = @transform_7, window_bounds = array<i64: 2, 128>}]} {
    %c0 = arith.constant 0 : index
    %c0_0 = arith.constant 0 : index
    %c0_1 = arith.constant 0 : index
    %0 = vector.load %arg1[%c0, %c0_0, %c0_1] : memref<2x16x512xbf16, #tpu.memory_space<vmem>>, vector<2x8x512xbf16>
    %1 = arith.extf %0 : vector<2x8x512xbf16> to vector<2x8x512xf32>
    %cst = arith.constant dense<0xFF800000> : vector<2x512xf32>
    %2 = vector.multi_reduction <maximumf>, %1, %cst [1] : vector<2x8x512xf32> to vector<2x512xf32>
    %cst_2 = arith.constant dense<0.000000e+00> : vector<2x512xf32>
    %3 = vector.multi_reduction <add>, %1, %cst_2 [1] : vector<2x8x512xf32> to vector<2x512xf32>
    %c0_3 = arith.constant 0 : index
    %c8 = arith.constant 8 : index
    %c0_4 = arith.constant 0 : index
    %4 = vector.load %arg1[%c0_3, %c8, %c0_4] : memref<2x16x512xbf16, #tpu.memory_space<vmem>>, vector<2x8x512xbf16>
    %5 = arith.extf %4 : vector<2x8x512xbf16> to vector<2x8x512xf32>
    %cst_5 = arith.constant dense<0xFF800000> : vector<2x512xf32>
    %6 = vector.multi_reduction <maximumf>, %5, %cst_5 [1] : vector<2x8x512xf32> to vector<2x512xf32>
    %cst_6 = arith.constant dense<0.000000e+00> : vector<2x512xf32>
    %7 = vector.multi_reduction <add>, %5, %cst_6 [1] : vector<2x8x512xf32> to vector<2x512xf32>
    %8 = arith.maximumf %2, %6 : vector<2x512xf32>
    %9 = arith.addf %3, %7 : vector<2x512xf32>
    %10 = arith.truncf %8 : vector<2x512xf32> to vector<2x512xbf16>
    %c0_7 = arith.constant 0 : index
    %c0_8 = arith.constant 0 : index
    %11 = vector.load %arg2[%c0_7, %c0_8] : memref<512x128xbf16, #tpu.memory_space<vmem>>, vector<512x128xbf16>
    %cst_9 = arith.constant dense<0.000000e+00> : vector<2x128xf32>
    %12 = tpu.matmul %10, %11, %cst_9 {dimension_numbers = #tpu.dot_dimension_numbers<[1], [0], [0], [1], [0, 0, 1, 1], [], []>} : vector<2x512xbf16>, vector<512x128xbf16>, vector<2x128xf32> -> vector<2x128xf32>
    %13 = arith.truncf %9 : vector<2x512xf32> to vector<2x512xbf16>
    %c0_10 = arith.constant 0 : index
    %c0_11 = arith.constant 0 : index
    %14 = vector.load %arg3[%c0_10, %c0_11] : memref<512x128xbf16, #tpu.memory_space<vmem>>, vector<512x128xbf16>
    %cst_12 = arith.constant dense<0.000000e+00> : vector<2x128xf32>
    %15 = tpu.matmul %13, %14, %cst_12 {dimension_numbers = #tpu.dot_dimension_numbers<[1], [0], [0], [1], [0, 0, 1, 1], [], []>} : vector<2x512xbf16>, vector<512x128xbf16>, vector<2x128xf32> -> vector<2x128xf32>
    %16 = arith.addf %12, %15 : vector<2x128xf32>
    %c0_13 = arith.constant 0 : index
    %c0_14 = arith.constant 0 : index
    %17 = vector.load %arg4[%c0_13, %c0_14] : memref<1x128xf32, #tpu.memory_space<vmem>>, vector<1x128xf32>
    %18 = vector.broadcast %17 : vector<1x128xf32> to vector<2x128xf32>
    %19 = arith.addf %16, %18 : vector<2x128xf32>
    %cst_15 = arith.constant 0.000000e+00 : f32
    %20 = vector.broadcast %cst_15 : f32 to vector<2x128xf32>
    %21 = arith.maximumf %19, %20 : vector<2x128xf32>
    %22 = arith.truncf %21 : vector<2x128xf32> to vector<2x128xbf16>
    %c0_16 = arith.constant 0 : index
    %c0_17 = arith.constant 0 : index
    %23 = vector.load %arg5[%c0_16, %c0_17] : memref<128x512xbf16, #tpu.memory_space<vmem>>, vector<128x512xbf16>
    %cst_18 = arith.constant dense<0.000000e+00> : vector<2x512xf32>
    %24 = tpu.matmul %22, %23, %cst_18 {dimension_numbers = #tpu.dot_dimension_numbers<[1], [0], [0], [1], [0, 0, 1, 1], [], []>} : vector<2x128xbf16>, vector<128x512xbf16>, vector<2x512xf32> -> vector<2x512xf32>
    %c0_19 = arith.constant 0 : index
    %c0_20 = arith.constant 0 : index
    %25 = vector.load %arg6[%c0_19, %c0_20] : memref<1x512xf32, #tpu.memory_space<vmem>>, vector<1x512xf32>
    %26 = vector.broadcast %25 : vector<1x512xf32> to vector<2x512xf32>
    %27 = arith.addf %24, %26 : vector<2x512xf32>
    %28 = arith.mulf %27, %27 : vector<2x512xf32>
    %cst_21 = arith.constant dense<0.000000e+00> : vector<2xf32>
    %29 = vector.multi_reduction <add>, %28, %cst_21 [1] : vector<2x512xf32> to vector<2xf32>
    %30 = vector.shape_cast %29 : vector<2xf32> to vector<2x1xf32>
    %cst_22 = arith.constant 1.000000e-24 : f32
    %31 = vector.broadcast %cst_22 : f32 to vector<2x1xf32>
    %32 = arith.maximumf %30, %31 : vector<2x1xf32>
    %33 = math.rsqrt %32 : vector<2x1xf32>
    %34 = vector.broadcast %33 : vector<2x1xf32> to vector<2x512xf32>
    %35 = arith.mulf %27, %34 : vector<2x512xf32>
    %36 = arith.truncf %35 : vector<2x512xf32> to vector<2x512xbf16>
    %c0_23 = arith.constant 0 : index
    %c0_24 = arith.constant 0 : index
    %37 = vector.load %arg7[%c0_23, %c0_24] : memref<512x128xbf16, #tpu.memory_space<vmem>>, vector<512x128xbf16>
    %cst_25 = arith.constant dense<0.000000e+00> : vector<2x128xf32>
    %38 = tpu.matmul %36, %37, %cst_25 {dimension_numbers = #tpu.dot_dimension_numbers<[1], [0], [0], [1], [0, 0, 1, 1], [], []>} : vector<2x512xbf16>, vector<512x128xbf16>, vector<2x128xf32> -> vector<2x128xf32>
    %c0_26 = arith.constant 0 : index
    %c0_27 = arith.constant 0 : index
    %39 = vector.load %arg8[%c0_26, %c0_27] : memref<2x128xf32, #tpu.memory_space<vmem>>, vector<2x128xf32>
    tpu.vector_store %arg8[%c0_26, %c0_27], %38 {strides = array<i32>} : memref<2x128xf32, #tpu.memory_space<vmem>>, vector<2x128xf32>,
    return
  }
  func.func @transform_0(%arg0: i32) -> (i32, i32, i32) {
    %c0_i32 = arith.constant 0 : i32
    %c0_i32_0 = arith.constant 0 : i32
    %c0_i32_1 = arith.constant 0 : i32
    return %arg0, %c0_i32, %c0_i32_0 : i32, i32, i32
  }
  func.func @transform_1(%arg0: i32) -> (i32, i32) {
    %c0_i32 = arith.constant 0 : i32
    %c0_i32_0 = arith.constant 0 : i32
    %c0_i32_1 = arith.constant 0 : i32
    return %c0_i32, %c0_i32_0 : i32, i32
  }
  func.func @transform_2(%arg0: i32) -> (i32, i32) {
    %c0_i32 = arith.constant 0 : i32
    %c0_i32_0 = arith.constant 0 : i32
    %c0_i32_1 = arith.constant 0 : i32
    return %c0_i32, %c0_i32_0 : i32, i32
  }
  func.func @transform_3(%arg0: i32) -> (i32, i32) {
    %c0_i32 = arith.constant 0 : i32
    %c0_i32_0 = arith.constant 0 : i32
    %c0_i32_1 = arith.constant 0 : i32
    return %c0_i32, %c0_i32_0 : i32, i32
  }
  func.func @transform_4(%arg0: i32) -> (i32, i32) {
    %c0_i32 = arith.constant 0 : i32
    %c0_i32_0 = arith.constant 0 : i32
    %c0_i32_1 = arith.constant 0 : i32
    return %c0_i32, %c0_i32_0 : i32, i32
  }
  func.func @transform_5(%arg0: i32) -> (i32, i32) {
    %c0_i32 = arith.constant 0 : i32
    %c0_i32_0 = arith.constant 0 : i32
    %c0_i32_1 = arith.constant 0 : i32
    return %c0_i32, %c0_i32_0 : i32, i32
  }
  func.func @transform_6(%arg0: i32) -> (i32, i32) {
    %c0_i32 = arith.constant 0 : i32
    %c0_i32_0 = arith.constant 0 : i32
    %c0_i32_1 = arith.constant 0 : i32
    return %c0_i32, %c0_i32_0 : i32, i32
  }
  func.func @transform_7(%arg0: i32) -> (i32, i32) {
    %c0_i32 = arith.constant 0 : i32
    %c0_i32_0 = arith.constant 0 : i32
    return %arg0, %c0_i32 : i32, i32
  }
}

</mosaic_0001>

<llo_original>
// kernel: tpu_custom_call.1
$region0: #{tpu_custom_call.1}
  #allocation0 [shape = 'u32[]', space=smem, size = 0x4, offset = 0x4, fixed_abs, tag = 'smem constant byte address 0x4 - core index']
  #allocation1 [shape = 'u32[144,128]{1,0:T(1,128)}', space=vmem, size = 0x12000, scoped, tag = 'internal scratch']
  %s0 = inlined_call_operand.hbm [shape: bf16[2,16,512], index: 0, kind: input, shape index: {}]
  %s1 = inlined_call_operand.hbm [shape: bf16[512,128], index: 1, kind: input, shape index: {}]
  %s2 = inlined_call_operand.hbm [shape: bf16[512,128], index: 2, kind: input, shape index: {}]
  %s3 = inlined_call_operand.vmem [shape: f32[1,128], index: 3, kind: input, shape index: {}]
  %s4 = inlined_call_operand.hbm [shape: bf16[128,512], index: 4, kind: input, shape index: {}]
  %s5 = inlined_call_operand.vmem [shape: f32[1,512], index: 5, kind: input, shape index: {}]
  %s6 = inlined_call_operand.hbm [shape: bf16[512,128], index: 6, kind: input, shape index: {}]
  %s7 = inlined_call_operand.hbm [shape: f32[2,128], index: 7, kind: output, shape index: {}]
  %s8 = sld [smem:[#allocation0]]
  $region58: #{tpu_custom_call.1} parent=0
    _
  %s10 = ssub.s32 1, %s8
  %s11 = scalar_select 0, %s10, %s8
  $region1: #{tpu_custom_call.1} parent=0
    #allocation2 [shape = 'u8[32768]{0}', space=vmem, size = 0x8000, scoped, tag = 'input window, operand 0, single buffered']
    #allocation3 [shape = 's32[1]{0}', space=sflag, size = 0x4, scoped, tag = 'scoped memory for tpu_custom_call.1']
    #allocation4 [shape = 's32[1]{0}', space=sflag, size = 0x4, scoped, tag = 'scoped memory for tpu_custom_call.1']
    #allocation5 [shape = 'u8[131072]{0}', space=vmem, size = 0x20000, scoped, tag = 'input window, operand 1, single buffered']
    #allocation6 [shape = 's32[1]{0}', space=sflag, size = 0x4, scoped, tag = 'scoped memory for tpu_custom_call.1']
    #allocation7 [shape = 'u8[131072]{0}', space=vmem, size = 0x20000, scoped, tag = 'input window, operand 2, single buffered']
    #allocation8 [shape = 'u8[131072]{0}', space=vmem, size = 0x20000, scoped, tag = 'input window, operand 4, single buffered']
    #allocation9 [shape = 's32[1]{0}', space=sflag, size = 0x4, scoped, tag = 'scoped memory for tpu_custom_call.1']
    #allocation10 [shape = 'u8[131072]{0}', space=vmem, size = 0x20000, scoped, tag = 'input window, operand 6, single buffered']
    #allocation11 [shape = 'u8[1024]{0}', space=vmem, size = 0x400, scoped, tag = 'output window, operand 0, single buffered']
    %12 = vsyncpa [#allocation3], 0
    %13 = vsyncpa [#allocation6], 0
    %14 = vsyncpa [#allocation9], 0
    %15 = vsyncpa [#allocation4], 0
    // Predicated region
    $region2: #{tpu_custom_call.1} parent=1 // pred_check
      _
    $region3: #{tpu_custom_call.1} parent=1 // pred_check_branch
      %17 = sbr.rel (0) target = $region5
    $region4: #{tpu_custom_call.1} parent=1 // pred_region
      %s19 = ssub.s32 1024, 1024
      %20 = vsyncadd [#allocation3], %s19
      %s21 = sshll.u32 [#allocation2], 4
      %s22 = int_to_ptr.vmem [resolvable:$true] %s21
      %27 = dma.hbm_to_vmem [thread:$0]  %s0, 1024, %s22, [#allocation3], 256, 256, 16
    $region5: #{tpu_custom_call.1} parent=1 // pred_fallthru
      _
    // Predicated region
    $region6: #{tpu_custom_call.1} parent=1 // pred_check
      _
    $region7: #{tpu_custom_call.1} parent=1 // pred_check_branch
      %29 = sbr.rel (0) target = $region9
    $region8: #{tpu_custom_call.1} parent=1 // pred_region
      %s31 = ssub.s32 4096, 4096
      %32 = vsyncadd [#allocation6], %s31
      %s33 = sshll.u32 [#allocation5], 4
      %s34 = int_to_ptr.vmem [resolvable:$true] %s33
      %39 = dma.hbm_to_vmem [thread:$0]  %s1, 4096, %s34, [#allocation6], 64, 64, 4
    $region9: #{tpu_custom_call.1} parent=1 // pred_fallthru
      _
    // Predicated region
    $region10: #{tpu_custom_call.1} parent=1 // pred_check
      _
    $region11: #{tpu_custom_call.1} parent=1 // pred_check_branch
      %41 = sbr.rel (0) target = $region13
    $region12: #{tpu_custom_call.1} parent=1 // pred_region
      %s43 = ssub.s32 4096, 4096
      %44 = vsyncadd [#allocation6], %s43
      %s45 = sshll.u32 [#allocation7], 4
      %s46 = int_to_ptr.vmem [resolvable:$true] %s45
      %51 = dma.hbm_to_vmem [thread:$0]  %s2, 4096, %s46, [#allocation6], 64, 64, 4
    $region13: #{tpu_custom_call.1} parent=1 // pred_fallthru
      _
    // Predicated region
    $region14: #{tpu_custom_call.1} parent=1 // pred_check
      _
    $region15: #{tpu_custom_call.1} parent=1 // pred_check_branch
      %53 = sbr.rel (0) target = $region17
    $region16: #{tpu_custom_call.1} parent=1 // pred_region
      _
    $region17: #{tpu_custom_call.1} parent=1 // pred_fallthru
      _
    // Predicated region
    $region18: #{tpu_custom_call.1} parent=1 // pred_check
      _
    $region19: #{tpu_custom_call.1} parent=1 // pred_check_branch
      %55 = sbr.rel (0) target = $region21
    $region20: #{tpu_custom_call.1} parent=1 // pred_region
      %s57 = ssub.s32 4096, 4096
      %58 = vsyncadd [#allocation9], %s57
      %s59 = sshll.u32 [#allocation8], 4
      %s60 = int_to_ptr.vmem [resolvable:$true] %s59
      %65 = dma.hbm_to_vmem [thread:$0]  %s4, 4096, %s60, [#allocation9], 256, 256, 16
    $region21: #{tpu_custom_call.1} parent=1 // pred_fallthru
      _
    // Predicated region
    $region22: #{tpu_custom_call.1} parent=1 // pred_check
      _
    $region23: #{tpu_custom_call.1} parent=1 // pred_check_branch
      %67 = sbr.rel (0) target = $region25
    $region24: #{tpu_custom_call.1} parent=1 // pred_region
      _
    $region25: #{tpu_custom_call.1} parent=1 // pred_fallthru
      _
    // Predicated region
    $region26: #{tpu_custom_call.1} parent=1 // pred_check
      _
    $region27: #{tpu_custom_call.1} parent=1 // pred_check_branch
      %69 = sbr.rel (0) target = $region29
    $region28: #{tpu_custom_call.1} parent=1 // pred_region
      %s71 = ssub.s32 4096, 4096
      %72 = vsyncadd [#allocation9], %s71
      %s73 = sshll.u32 [#allocation10], 4
      %s74 = int_to_ptr.vmem [resolvable:$true] %s73
      %79 = dma.hbm_to_vmem [thread:$0]  %s6, 4096, %s74, [#allocation9], 64, 64, 4
    $region29: #{tpu_custom_call.1} parent=1 // pred_fallthru
      _
    // Predicated region
    $region30: #{tpu_custom_call.1} parent=1 // pred_check
      _
    $region31: #{tpu_custom_call.1} parent=1 // pred_check_branch
      %81 = sbr.rel (0) target = $region33
    $region32: #{tpu_custom_call.1} parent=1 // pred_region
      %82 = dma.done [#allocation3], 1024
    $region33: #{tpu_custom_call.1} parent=1 // pred_fallthru
      _
    // Predicated region
    $region34: #{tpu_custom_call.1} parent=1 // pred_check
      _
    $region35: #{tpu_custom_call.1} parent=1 // pred_check_branch
      %84 = sbr.rel (0) target = $region37
    $region36: #{tpu_custom_call.1} parent=1 // pred_region
      %85 = dma.done [#allocation6], 4096
    $region37: #{tpu_custom_call.1} parent=1 // pred_fallthru
      _
    // Predicated region
    $region38: #{tpu_custom_call.1} parent=1 // pred_check
      _
    $region39: #{tpu_custom_call.1} parent=1 // pred_check_branch
      %87 = sbr.rel (0) target = $region41
    $region40: #{tpu_custom_call.1} parent=1 // pred_region
      %88 = dma.done [#allocation6], 4096
    $region41: #{tpu_custom_call.1} parent=1 // pred_fallthru
      _
    // Predicated region
    $region42: #{tpu_custom_call.1} parent=1 // pred_check
      _
    $region43: #{tpu_custom_call.1} parent=1 // pred_check_branch
      %90 = sbr.rel (0) target = $region45
    $region44: #{tpu_custom_call.1} parent=1 // pred_region
      %91 = dma.done [#allocation9], 4096
    $region45: #{tpu_custom_call.1} parent=1 // pred_fallthru
      _
    // Predicated region
    $region46: #{tpu_custom_call.1} parent=1 // pred_check
      _
    $region47: #{tpu_custom_call.1} parent=1 // pred_check_branch
      %93 = sbr.rel (0) target = $region49
    $region48: #{tpu_custom_call.1} parent=1 // pred_region
      %94 = dma.done [#allocation9], 4096
    $region49: #{tpu_custom_call.1} parent=1 // pred_fallthru
      _
    %v96 = vld [vmem:[#allocation2] sm:$0xff]
    %v97 = vld [vmem:[#allocation2 + $0x8] sm:$0xff]
    %v98 = vld [vmem:[#allocation2 + $0x20] sm:$0xff]
    %v99 = vld [vmem:[#allocation2 + $0x28] sm:$0xff]
    %v100 = vunpack.c.l.bf16 %v96
    %v101 = vunpack.c.h.bf16 %v96
    %v102 = vunpack.c.l.bf16 %v97
    %v103 = vunpack.c.h.bf16 %v97
    %v104 = vunpack.c.l.bf16 %v98
    %v105 = vunpack.c.h.bf16 %v98
    %v106 = vunpack.c.l.bf16 %v99
    %v107 = vunpack.c.h.bf16 %v99
    %v108 = vrot.slane %v100, 4
    %v109 = vmax.f32 %v100, %v108
    %v110 = vrot.slane %v109, 2
    %v111 = vmax.f32 %v109, %v110
    %v112 = vrot.slane %v111, 1
    %v113 = vmax.f32 %v111, %v112
    %v114 = vrot.slane %v101, 4
    %v115 = vmax.f32 %v101, %v114
    %v116 = vrot.slane %v115, 2
    %v117 = vmax.f32 %v115, %v116
    %v118 = vrot.slane %v117, 1
    %v119 = vmax.f32 %v117, %v118
    %v120 = vrot.slane %v102, 4
    %v121 = vmax.f32 %v102, %v120
    %v122 = vrot.slane %v121, 2
    %v123 = vmax.f32 %v121, %v122
    %v124 = vrot.slane %v123, 1
    %v125 = vmax.f32 %v123, %v124
    %v126 = vrot.slane %v103, 4
    %v127 = vmax.f32 %v103, %v126
    %v128 = vrot.slane %v127, 2
    %v129 = vmax.f32 %v127, %v128
    %v130 = vrot.slane %v129, 1
    %v131 = vmax.f32 %v129, %v130
    %v132 = vrot.slane %v104, 4
    %v133 = vmax.f32 %v104, %v132
    %v134 = vrot.slane %v133, 2
    %v135 = vmax.f32 %v133, %v134
    %v136 = vrot.slane %v135, 1
    %v137 = vmax.f32 %v135, %v136
    %v138 = vrot.slane %v105, 4
    %v139 = vmax.f32 %v105, %v138
    %v140 = vrot.slane %v139, 2
    %v141 = vmax.f32 %v139, %v140
    %v142 = vrot.slane %v141, 1
    %v143 = vmax.f32 %v141, %v142
    %v144 = vrot.slane %v106, 4
    %v145 = vmax.f32 %v106, %v144
    %v146 = vrot.slane %v145, 2
    %v147 = vmax.f32 %v145, %v146
    %v148 = vrot.slane %v147, 1
    %v149 = vmax.f32 %v147, %v148
    %v150 = vrot.slane %v107, 4
    %v151 = vmax.f32 %v107, %v150
    %v152 = vrot.slane %v151, 2
    %v153 = vmax.f32 %v151, %v152
    %v154 = vrot.slane %v153, 1
    %v155 = vmax.f32 %v153, %v154
    %v156 = vrot.slane %v100, 4
    %v157 = vadd.f32 %v100, %v156
    %v158 = vrot.slane %v157, 2
    %v159 = vadd.f32 %v157, %v158
    %v160 = vrot.slane %v159, 1
    %v161 = vadd.f32 %v159, %v160
    %v162 = vrot.slane %v101, 4
    %v163 = vadd.f32 %v101, %v162
    %v164 = vrot.slane %v163, 2
    %v165 = vadd.f32 %v163, %v164
    %v166 = vrot.slane %v165, 1
    %v167 = vadd.f32 %v165, %v166
    %v168 = vrot.slane %v102, 4
    %v169 = vadd.f32 %v102, %v168
    %v170 = vrot.slane %v169, 2
    %v171 = vadd.f32 %v169, %v170
    %v172 = vrot.slane %v171, 1
    %v173 = vadd.f32 %v171, %v172
    %v174 = vrot.slane %v103, 4
    %v175 = vadd.f32 %v103, %v174
    %v176 = vrot.slane %v175, 2
    %v177 = vadd.f32 %v175, %v176
    %v178 = vrot.slane %v177, 1
    %v179 = vadd.f32 %v177, %v178
    %v180 = vrot.slane %v104, 4
    %v181 = vadd.f32 %v104, %v180
    %v182 = vrot.slane %v181, 2
    %v183 = vadd.f32 %v181, %v182
    %v184 = vrot.slane %v183, 1
    %v185 = vadd.f32 %v183, %v184
    %v186 = vrot.slane %v105, 4
    %v187 = vadd.f32 %v105, %v186
    %v188 = vrot.slane %v187, 2
    %v189 = vadd.f32 %v187, %v188
    %v190 = vrot.slane %v189, 1
    %v191 = vadd.f32 %v189, %v190
    %v192 = vrot.slane %v106, 4
    %v193 = vadd.f32 %v106, %v192
    %v194 = vrot.slane %v193, 2
    %v195 = vadd.f32 %v193, %v194
    %v196 = vrot.slane %v195, 1
    %v197 = vadd.f32 %v195, %v196
    %v198 = vrot.slane %v107, 4
    %v199 = vadd.f32 %v107, %v198
    %v200 = vrot.slane %v199, 2
    %v201 = vadd.f32 %v199, %v200
    %v202 = vrot.slane %v201, 1
    %v203 = vadd.f32 %v201, %v202
    %v204 = vld [vmem:[#allocation2 + $0x10] sm:$0xff]
    %v205 = vld [vmem:[#allocation2 + $0x18] sm:$0xff]
    %v206 = vld [vmem:[#allocation2 + $0x30] sm:$0xff]
    %v207 = vld [vmem:[#allocation2 + $0x38] sm:$0xff]
    %v208 = vunpack.c.l.bf16 %v204
    %v209 = vunpack.c.h.bf16 %v204
    %v210 = vunpack.c.l.bf16 %v205
    %v211 = vunpack.c.h.bf16 %v205
    %v212 = vunpack.c.l.bf16 %v206
    %v213 = vunpack.c.h.bf16 %v206
    %v214 = vunpack.c.l.bf16 %v207
    %v215 = vunpack.c.h.bf16 %v207
    %v216 = vrot.slane %v208, 4
    %v217 = vmax.f32 %v208, %v216
    %v218 = vrot.slane %v217, 2
    %v219 = vmax.f32 %v217, %v218
    %v220 = vrot.slane %v219, 1
    %v221 = vmax.f32 %v219, %v220
    %v222 = vrot.slane %v209, 4
    %v223 = vmax.f32 %v209, %v222
    %v224 = vrot.slane %v223, 2
    %v225 = vmax.f32 %v223, %v224
    %v226 = vrot.slane %v225, 1
    %v227 = vmax.f32 %v225, %v226
    %v228 = vrot.slane %v210, 4
    %v229 = vmax.f32 %v210, %v228
    %v230 = vrot.slane %v229, 2
    %v231 = vmax.f32 %v229, %v230
    %v232 = vrot.slane %v231, 1
    %v233 = vmax.f32 %v231, %v232
    %v234 = vrot.slane %v211, 4
    %v235 = vmax.f32 %v211, %v234
    %v236 = vrot.slane %v235, 2
    %v237 = vmax.f32 %v235, %v236
    %v238 = vrot.slane %v237, 1
    %v239 = vmax.f32 %v237, %v238
    %v240 = vrot.slane %v212, 4
    %v241 = vmax.f32 %v212, %v240
    %v242 = vrot.slane %v241, 2
    %v243 = vmax.f32 %v241, %v242
    %v244 = vrot.slane %v243, 1
    %v245 = vmax.f32 %v243, %v244
    %v246 = vrot.slane %v213, 4
    %v247 = vmax.f32 %v213, %v246
    %v248 = vrot.slane %v247, 2
    %v249 = vmax.f32 %v247, %v248
    %v250 = vrot.slane %v249, 1
    %v251 = vmax.f32 %v249, %v250
    %v252 = vrot.slane %v214, 4
    %v253 = vmax.f32 %v214, %v252
    %v254 = vrot.slane %v253, 2
    %v255 = vmax.f32 %v253, %v254
    %v256 = vrot.slane %v255, 1
    %v257 = vmax.f32 %v255, %v256
    %v258 = vrot.slane %v215, 4
    %v259 = vmax.f32 %v215, %v258
    %v260 = vrot.slane %v259, 2
    %v261 = vmax.f32 %v259, %v260
    %v262 = vrot.slane %v261, 1
    %v263 = vmax.f32 %v261, %v262
    %v264 = vrot.slane %v208, 4
    %v265 = vadd.f32 %v208, %v264
    %v266 = vrot.slane %v265, 2
    %v267 = vadd.f32 %v265, %v266
    %v268 = vrot.slane %v267, 1
    %v269 = vadd.f32 %v267, %v268
    %v270 = vrot.slane %v209, 4
    %v271 = vadd.f32 %v209, %v270
    %v272 = vrot.slane %v271, 2
    %v273 = vadd.f32 %v271, %v272
    %v274 = vrot.slane %v273, 1
    %v275 = vadd.f32 %v273, %v274
    %v276 = vrot.slane %v210, 4
    %v277 = vadd.f32 %v210, %v276
    %v278 = vrot.slane %v277, 2
    %v279 = vadd.f32 %v277, %v278
    %v280 = vrot.slane %v279, 1
    %v281 = vadd.f32 %v279, %v280
    %v282 = vrot.slane %v211, 4
    %v283 = vadd.f32 %v211, %v282
    %v284 = vrot.slane %v283, 2
    %v285 = vadd.f32 %v283, %v284
    %v286 = vrot.slane %v285, 1
    %v287 = vadd.f32 %v285, %v286
    %v288 = vrot.slane %v212, 4
    %v289 = vadd.f32 %v212, %v288
    %v290 = vrot.slane %v289, 2
    %v291 = vadd.f32 %v289, %v290
    %v292 = vrot.slane %v291, 1
    %v293 = vadd.f32 %v291, %v292
    %v294 = vrot.slane %v213, 4
    %v295 = vadd.f32 %v213, %v294
    %v296 = vrot.slane %v295, 2
    %v297 = vadd.f32 %v295, %v296
    %v298 = vrot.slane %v297, 1
    %v299 = vadd.f32 %v297, %v298
    %v300 = vrot.slane %v214, 4
    %v301 = vadd.f32 %v214, %v300
    %v302 = vrot.slane %v301, 2
    %v303 = vadd.f32 %v301, %v302
    %v304 = vrot.slane %v303, 1
    %v305 = vadd.f32 %v303, %v304
    %v306 = vrot.slane %v215, 4
    %v307 = vadd.f32 %v215, %v306
    %v308 = vrot.slane %v307, 2
    %v309 = vadd.f32 %v307, %v308
    %v310 = vrot.slane %v309, 1
    %v311 = vadd.f32 %v309, %v310
    %v312 = vmax.f32 %v113, %v221
    %v313 = vmax.f32 %v119, %v227
    %v314 = vmax.f32 %v125, %v233
    %v315 = vmax.f32 %v131, %v239
    %v316 = vmax.f32 %v137, %v245
    %v317 = vmax.f32 %v143, %v251
    %v318 = vmax.f32 %v149, %v257
    %v319 = vmax.f32 %v155, %v263
    %v320 = vadd.f32 %v161, %v269
    %v321 = vadd.f32 %v167, %v275
    %v322 = vadd.f32 %v173, %v281
    %v323 = vadd.f32 %v179, %v287
    %v324 = vadd.f32 %v185, %v293
    %v325 = vadd.f32 %v191, %v299
    %v326 = vadd.f32 %v197, %v305
    %v327 = vadd.f32 %v203, %v311
    %v328 = vpack.c.bf16 %v312, %v312
    %v329 = vpack.c.bf16 %v313, %v313
    %v330 = vpack.c.bf16 %v314, %v314
    %v331 = vpack.c.bf16 %v315, %v315
    %v332 = vpack.c.bf16 %v316, %v316
    %v333 = vpack.c.bf16 %v317, %v317
    %v334 = vpack.c.bf16 %v318, %v318
    %v335 = vpack.c.bf16 %v319, %v319
    %v336 = vld [vmem:[#allocation5] sm:$0xf]
    %v337 = vld [vmem:[#allocation5 + $0x4] sm:$0xf]
    %v338 = vld [vmem:[#allocation5 + $0x8] sm:$0xf]
    %v339 = vld [vmem:[#allocation5 + $0xc] sm:$0xf]
    %v340 = vld [vmem:[#allocation5 + $0x10] sm:$0xf]
    %v341 = vld [vmem:[#allocation5 + $0x14] sm:$0xf]
    %v342 = vld [vmem:[#allocation5 + $0x18] sm:$0xf]
    %v343 = vld [vmem:[#allocation5 + $0x1c] sm:$0xf]
    %v344 = vld [vmem:[#allocation5 + $0x20] sm:$0xf]
    %v345 = vld [vmem:[#allocation5 + $0x24] sm:$0xf]
    %v346 = vld [vmem:[#allocation5 + $0x28] sm:$0xf]
    %v347 = vld [vmem:[#allocation5 + $0x2c] sm:$0xf]
    %v348 = vld [vmem:[#allocation5 + $0x30] sm:$0xf]
    %v349 = vld [vmem:[#allocation5 + $0x34] sm:$0xf]
    %v350 = vld [vmem:[#allocation5 + $0x38] sm:$0xf]
    %v351 = vld [vmem:[#allocation5 + $0x3c] sm:$0xf]
    %v352 = vld [vmem:[#allocation5 + $0x40] sm:$0xf]
    %v353 = vld [vmem:[#allocation5 + $0x44] sm:$0xf]
    %v354 = vld [vmem:[#allocation5 + $0x48] sm:$0xf]
    %v355 = vld [vmem:[#allocation5 + $0x4c] sm:$0xf]
    %v356 = vld [vmem:[#allocation5 + $0x50] sm:$0xf]
    %v357 = vld [vmem:[#allocation5 + $0x54] sm:$0xf]
    %v358 = vld [vmem:[#allocation5 + $0x58] sm:$0xf]
    %v359 = vld [vmem:[#allocation5 + $0x5c] sm:$0xf]
    %v360 = vld [vmem:[#allocation5 + $0x60] sm:$0xf]
    %v361 = vld [vmem:[#allocation5 + $0x64] sm:$0xf]
    %v362 = vld [vmem:[#allocation5 + $0x68] sm:$0xf]
    %v363 = vld [vmem:[#allocation5 + $0x6c] sm:$0xf]
    %v364 = vld [vmem:[#allocation5 + $0x70] sm:$0xf]
    %v365 = vld [vmem:[#allocation5 + $0x74] sm:$0xf]
    %v366 = vld [vmem:[#allocation5 + $0x78] sm:$0xf]
    %v367 = vld [vmem:[#allocation5 + $0x7c] sm:$0xf]
    %v368 = vld [vmem:[#allocation5 + $0x80] sm:$0xf]
    %v369 = vld [vmem:[#allocation5 + $0x84] sm:$0xf]
    %v370 = vld [vmem:[#allocation5 + $0x88] sm:$0xf]
    %v371 = vld [vmem:[#allocation5 + $0x8c] sm:$0xf]
    %v372 = vld [vmem:[#allocation5 + $0x90] sm:$0xf]
    %v373 = vld [vmem:[#allocation5 + $0x94] sm:$0xf]
    %v374 = vld [vmem:[#allocation5 + $0x98] sm:$0xf]
    %v375 = vld [vmem:[#allocation5 + $0x9c] sm:$0xf]
    %v376 = vld [vmem:[#allocation5 + $0xa0] sm:$0xf]
    %v377 = vld [vmem:[#allocation5 + $0xa4] sm:$0xf]
    %v378 = vld [vmem:[#allocation5 + $0xa8] sm:$0xf]
    %v379 = vld [vmem:[#allocation5 + $0xac] sm:$0xf]
    %v380 = vld [vmem:[#allocation5 + $0xb0] sm:$0xf]
    %v381 = vld [vmem:[#allocation5 + $0xb4] sm:$0xf]
    %v382 = vld [vmem:[#allocation5 + $0xb8] sm:$0xf]
    %v383 = vld [vmem:[#allocation5 + $0xbc] sm:$0xf]
    %v384 = vld [vmem:[#allocation5 + $0xc0] sm:$0xf]
    %v385 = vld [vmem:[#allocation5 + $0xc4] sm:$0xf]
    %v386 = vld [vmem:[#allocation5 + $0xc8] sm:$0xf]
    %v387 = vld [vmem:[#allocation5 + $0xcc] sm:$0xf]
    %v388 = vld [vmem:[#allocation5 + $0xd0] sm:$0xf]
    %v389 = vld [vmem:[#allocation5 + $0xd4] sm:$0xf]
    %v390 = vld [vmem:[#allocation5 + $0xd8] sm:$0xf]
    %v391 = vld [vmem:[#allocation5 + $0xdc] sm:$0xf]
    %v392 = vld [vmem:[#allocation5 + $0xe0] sm:$0xf]
    %v393 = vld [vmem:[#allocation5 + $0xe4] sm:$0xf]
    %v394 = vld [vmem:[#allocation5 + $0xe8] sm:$0xf]
    %v395 = vld [vmem:[#allocation5 + $0xec] sm:$0xf]
    %v396 = vld [vmem:[#allocation5 + $0xf0] sm:$0xf]
    %v397 = vld [vmem:[#allocation5 + $0xf4] sm:$0xf]
    %v398 = vld [vmem:[#allocation5 + $0xf8] sm:$0xf]
    %v399 = vld [vmem:[#allocation5 + $0xfc] sm:$0xf]
    %v400 = vpack.c.bf16 %v320, %v320
    %v401 = vpack.c.bf16 %v321, %v321
    %v402 = vpack.c.bf16 %v322, %v322
    %v403 = vpack.c.bf16 %v323, %v323
    %v404 = vpack.c.bf16 %v324, %v324
    %v405 = vpack.c.bf16 %v325, %v325
    %v406 = vpack.c.bf16 %v326, %v326
    %v407 = vpack.c.bf16 %v327, %v327
    %v408 = vld [vmem:[#allocation7] sm:$0xf]
    %v409 = vld [vmem:[#allocation7 + $0x4] sm:$0xf]
    %v410 = vld [vmem:[#allocation7 + $0x8] sm:$0xf]
    %v411 = vld [vmem:[#allocation7 + $0xc] sm:$0xf]
    %v412 = vld [vmem:[#allocation7 + $0x10] sm:$0xf]
    %v413 = vld [vmem:[#allocation7 + $0x14] sm:$0xf]
    %v414 = vld [vmem:[#allocation7 + $0x18] sm:$0xf]
    %v415 = vld [vmem:[#allocation7 + $0x1c] sm:$0xf]
    %v416 = vld [vmem:[#allocation7 + $0x20] sm:$0xf]
    %v417 = vld [vmem:[#allocation7 + $0x24] sm:$0xf]
    %v418 = vld [vmem:[#allocation7 + $0x28] sm:$0xf]
    %v419 = vld [vmem:[#allocation7 + $0x2c] sm:$0xf]
    %v420 = vld [vmem:[#allocation7 + $0x30] sm:$0xf]
    %v421 = vld [vmem:[#allocation7 + $0x34] sm:$0xf]
    %v422 = vld [vmem:[#allocation7 + $0x38] sm:$0xf]
    %v423 = vld [vmem:[#allocation7 + $0x3c] sm:$0xf]
    %v424 = vld [vmem:[#allocation7 + $0x40] sm:$0xf]
    %v425 = vld [vmem:[#allocation7 + $0x44] sm:$0xf]
    %v426 = vld [vmem:[#allocation7 + $0x48] sm:$0xf]
    %v427 = vld [vmem:[#allocation7 + $0x4c] sm:$0xf]
    %v428 = vld [vmem:[#allocation7 + $0x50] sm:$0xf]
    %v429 = vld [vmem:[#allocation7 + $0x54] sm:$0xf]
    %v430 = vld [vmem:[#allocation7 + $0x58] sm:$0xf]
    %v431 = vld [vmem:[#allocation7 + $0x5c] sm:$0xf]
    %v432 = vld [vmem:[#allocation7 + $0x60] sm:$0xf]
    %v433 = vld [vmem:[#allocation7 + $0x64] sm:$0xf]
    %v434 = vld [vmem:[#allocation7 + $0x68] sm:$0xf]
    %v435 = vld [vmem:[#allocation7 + $0x6c] sm:$0xf]
    %v436 = vld [vmem:[#allocation7 + $0x70] sm:$0xf]
    %v437 = vld [vmem:[#allocation7 + $0x74] sm:$0xf]
    %v438 = vld [vmem:[#allocation7 + $0x78] sm:$0xf]
    %v439 = vld [vmem:[#allocation7 + $0x7c] sm:$0xf]
    %v440 = vld [vmem:[#allocation7 + $0x80] sm:$0xf]
    %v441 = vld [vmem:[#allocation7 + $0x84] sm:$0xf]
    %v442 = vld [vmem:[#allocation7 + $0x88] sm:$0xf]
    %v443 = vld [vmem:[#allocation7 + $0x8c] sm:$0xf]
    %v444 = vld [vmem:[#allocation7 + $0x90] sm:$0xf]
    %v445 = vld [vmem:[#allocation7 + $0x94] sm:$0xf]
    %v446 = vld [vmem:[#allocation7 + $0x98] sm:$0xf]
    %v447 = vld [vmem:[#allocation7 + $0x9c] sm:$0xf]
    %v448 = vld [vmem:[#allocation7 + $0xa0] sm:$0xf]
    %v449 = vld [vmem:[#allocation7 + $0xa4] sm:$0xf]
    %v450 = vld [vmem:[#allocation7 + $0xa8] sm:$0xf]
    %v451 = vld [vmem:[#allocation7 + $0xac] sm:$0xf]
    %v452 = vld [vmem:[#allocation7 + $0xb0] sm:$0xf]
    %v453 = vld [vmem:[#allocation7 + $0xb4] sm:$0xf]
    %v454 = vld [vmem:[#allocation7 + $0xb8] sm:$0xf]
    %v455 = vld [vmem:[#allocation7 + $0xbc] sm:$0xf]
    %v456 = vld [vmem:[#allocation7 + $0xc0] sm:$0xf]
    %v457 = vld [vmem:[#allocation7 + $0xc4] sm:$0xf]
    %v458 = vld [vmem:[#allocation7 + $0xc8] sm:$0xf]
    %v459 = vld [vmem:[#allocation7 + $0xcc] sm:$0xf]
    %v460 = vld [vmem:[#allocation7 + $0xd0] sm:$0xf]
    %v461 = vld [vmem:[#allocation7 + $0xd4] sm:$0xf]
    %v462 = vld [vmem:[#allocation7 + $0xd8] sm:$0xf]
    %v463 = vld [vmem:[#allocation7 + $0xdc] sm:$0xf]
    %v464 = vld [vmem:[#allocation7 + $0xe0] sm:$0xf]
    %v465 = vld [vmem:[#allocation7 + $0xe4] sm:$0xf]
    %v466 = vld [vmem:[#allocation7 + $0xe8] sm:$0xf]
    %v467 = vld [vmem:[#allocation7 + $0xec] sm:$0xf]
    %v468 = vld [vmem:[#allocation7 + $0xf0] sm:$0xf]
    %v469 = vld [vmem:[#allocation7 + $0xf4] sm:$0xf]
    %v470 = vld [vmem:[#allocation7 + $0xf8] sm:$0xf]
    %v471 = vld [vmem:[#allocation7 + $0xfc] sm:$0xf]
    %v480 = vunpack.c.l.b16 %v400
    %v481 = vunpack.c.l.b16 %v401
    %v482 = vunpack.c.l.b16 %v402
    %v483 = vunpack.c.l.b16 %v403
    %v484 = vunpack.c.l.b16 %v404
    %v485 = vunpack.c.l.b16 %v405
    %v486 = vunpack.c.l.b16 %v406
    %v487 = vunpack.c.l.b16 %v407
    %vm488 = vcmask 1041409
    %v489 = vsel %vm488, %v484, %v480
    %v490 = vsel %vm488, %v485, %v481
    %v491 = vsel %vm488, %v486, %v482
    %v492 = vsel %vm488, %v487, %v483
    %v493 = vpack.c.b16 %v489, %v489
    %v494 = vpack.c.b16 %v490, %v490
    %v495 = vpack.c.b16 %v491, %v491
    %v496 = vpack.c.b16 %v492, %v492
    %v565 = vunpack.c.l.b16 %v408
    %v566 = vunpack.c.l.b16 %v409
    %v567 = vunpack.c.l.b16 %v410
    %v568 = vunpack.c.l.b16 %v411
    %v569 = vunpack.c.l.b16 %v412
    %v570 = vunpack.c.l.b16 %v413
    %v571 = vunpack.c.l.b16 %v414
    %v572 = vunpack.c.l.b16 %v415
    %v573 = vunpack.c.l.b16 %v416
    %v574 = vunpack.c.l.b16 %v417
    %v575 = vunpack.c.l.b16 %v418
    %v576 = vunpack.c.l.b16 %v419
    %v577 = vunpack.c.l.b16 %v420
    %v578 = vunpack.c.l.b16 %v421
    %v579 = vunpack.c.l.b16 %v422
    %v580 = vunpack.c.l.b16 %v423
    %v581 = vunpack.c.l.b16 %v424
    %v582 = vunpack.c.l.b16 %v425
    %v583 = vunpack.c.l.b16 %v426
    %v584 = vunpack.c.l.b16 %v427
    %v585 = vunpack.c.l.b16 %v428
    %v586 = vunpack.c.l.b16 %v429
    %v587 = vunpack.c.l.b16 %v430
    %v588 = vunpack.c.l.b16 %v431
    %v589 = vunpack.c.l.b16 %v432
    %v590 = vunpack.c.l.b16 %v433
    %v591 = vunpack.c.l.b16 %v434
    %v592 = vunpack.c.l.b16 %v435
    %v593 = vunpack.c.l.b16 %v436
    %v594 = vunpack.c.l.b16 %v437
    %v595 = vunpack.c.l.b16 %v438
    %v596 = vunpack.c.l.b16 %v439
    %v597 = vunpack.c.l.b16 %v440
    %v598 = vunpack.c.l.b16 %v441
    %v599 = vunpack.c.l.b16 %v442
    %v600 = vunpack.c.l.b16 %v443
    %v601 = vunpack.c.l.b16 %v444
    %v602 = vunpack.c.l.b16 %v445
    %v603 = vunpack.c.l.b16 %v446
    %v604 = vunpack.c.l.b16 %v447
    %v605 = vunpack.c.l.b16 %v448
    %v606 = vunpack.c.l.b16 %v449
    %v607 = vunpack.c.l.b16 %v450
    %v608 = vunpack.c.l.b16 %v451
    %v609 = vunpack.c.l.b16 %v452
    %v610 = vunpack.c.l.b16 %v453
    %v611 = vunpack.c.l.b16 %v454
    %v612 = vunpack.c.l.b16 %v455
    %v613 = vunpack.c.l.b16 %v456
    %v614 = vunpack.c.l.b16 %v457
    %v615 = vunpack.c.l.b16 %v458
    %v616 = vunpack.c.l.b16 %v459
    %v617 = vunpack.c.l.b16 %v460
    %v618 = vunpack.c.l.b16 %v461
    %v619 = vunpack.c.l.b16 %v462
    %v620 = vunpack.c.l.b16 %v463
    %v621 = vunpack.c.l.b16 %v464
    %v622 = vunpack.c.l.b16 %v465
    %v623 = vunpack.c.l.b16 %v466
    %v624 = vunpack.c.l.b16 %v467
    %v625 = vunpack.c.l.b16 %v468
    %v626 = vunpack.c.l.b16 %v469
    %v627 = vunpack.c.l.b16 %v470
    %v628 = vunpack.c.l.b16 %v471
    %v629 = vpack.c.b16 %v566, %v565
    %v630 = vpack.c.b16 %v568, %v567
    %v631 = vpack.c.b16 %v570, %v569
    %v632 = vpack.c.b16 %v572, %v571
    %v633 = vpack.c.b16 %v574, %v573
    %v634 = vpack.c.b16 %v576, %v575
    %v635 = vpack.c.b16 %v578, %v577
    %v636 = vpack.c.b16 %v580, %v579
    %v637 = vpack.c.b16 %v582, %v581
    %v638 = vpack.c.b16 %v584, %v583
    %v639 = vpack.c.b16 %v586, %v585
    %v640 = vpack.c.b16 %v588, %v587
    %v641 = vpack.c.b16 %v590, %v589
    %v642 = vpack.c.b16 %v592, %v591
    %v643 = vpack.c.b16 %v594, %v593
    %v644 = vpack.c.b16 %v596, %v595
    %v645 = vpack.c.b16 %v598, %v597
    %v646 = vpack.c.b16 %v600, %v599
    %v647 = vpack.c.b16 %v602, %v601
    %v648 = vpack.c.b16 %v604, %v603
    %v649 = vpack.c.b16 %v606, %v605
    %v650 = vpack.c.b16 %v608, %v607
    %v651 = vpack.c.b16 %v610, %v609
    %v652 = vpack.c.b16 %v612, %v611
    %v653 = vpack.c.b16 %v614, %v613
    %v654 = vpack.c.b16 %v616, %v615
    %v655 = vpack.c.b16 %v618, %v617
    %v656 = vpack.c.b16 %v620, %v619
    %v657 = vpack.c.b16 %v622, %v621
    %v658 = vpack.c.b16 %v624, %v623
    %v659 = vpack.c.b16 %v626, %v625
    %v660 = vpack.c.b16 %v628, %v627
    %693 = vmatprep.subr.bf16.mxu0 0
    %694 = vmatpush1.bf16.msra.mxu0 %v636
    %695 = vmatprep.subr.bf16.mxu0 0
    %696 = vmatpush1.bf16.msra.mxu0 %v635
    %697 = vmatprep.subr.bf16.mxu0 0
    %698 = vmatpush1.bf16.msra.mxu0 %v634
    %699 = vmatprep.subr.bf16.mxu0 0
    %700 = vmatpush1.bf16.msra.mxu0 %v633
    %701 = vmatprep.subr.bf16.mxu0 0
    %702 = vmatpush1.bf16.msra.mxu0 %v632
    %703 = vmatprep.subr.bf16.mxu0 0
    %704 = vmatpush1.bf16.msra.mxu0 %v631
    %705 = vmatprep.subr.bf16.mxu0 0
    %706 = vmatpush1.bf16.msra.mxu0 %v630
    %707 = vmatprep.subr.bf16.mxu0 0
    %708 = vmatpush1.bf16.msra.mxu0 %v629
    %709 = vmatprep.subr.bf16.mxu0 0
    %710 = vmatpush2.bf16.msra.mxu0 %v644
    %711 = vmatprep.subr.bf16.mxu0 0
    %712 = vmatpush2.bf16.msra.mxu0 %v643
    %713 = vmatprep.subr.bf16.mxu0 0
    %714 = vmatpush2.bf16.msra.mxu0 %v642
    %715 = vmatprep.subr.bf16.mxu0 0
    %716 = vmatpush2.bf16.msra.mxu0 %v641
    %717 = vmatprep.subr.bf16.mxu0 0
    %718 = vmatpush2.bf16.msra.mxu0 %v640
    %719 = vmatprep.subr.bf16.mxu0 0
    %720 = vmatpush2.bf16.msra.mxu0 %v639
    %721 = vmatprep.subr.bf16.mxu0 0
    %722 = vmatpush2.bf16.msra.mxu0 %v638
    %723 = vmatprep.subr.bf16.mxu0 0
    %724 = vmatpush2.bf16.msra.mxu0 %v637
    %725 = vmatprep.mubr.bf16.mxu0 %v494
    %726 = vmatmul.mubr.bf16.gmra.mxu0 %v493
    %v727 = vpop.f32.mrf.mxu0
    %v728 = vadd.f32 0.0, %v727
    %v729 = vpop.f32.mrf.mxu0
    %v730 = vpop.f32.mrf.mxu0
    %v731 = vpop.f32.mrf.mxu0
    %732 = vdwg.mxu0
    %733 = vmatprep.subr.bf16.mxu0 0
    %734 = vmatpush1.bf16.msra.mxu0 %v652
    %735 = vmatprep.subr.bf16.mxu0 0
    %736 = vmatpush1.bf16.msra.mxu0 %v651
    %737 = vmatprep.subr.bf16.mxu0 0
    %738 = vmatpush1.bf16.msra.mxu0 %v650
    %739 = vmatprep.subr.bf16.mxu0 0
    %740 = vmatpush1.bf16.msra.mxu0 %v649
    %741 = vmatprep.subr.bf16.mxu0 0
    %742 = vmatpush1.bf16.msra.mxu0 %v648
    %743 = vmatprep.subr.bf16.mxu0 0
    %744 = vmatpush1.bf16.msra.mxu0 %v647
    %745 = vmatprep.subr.bf16.mxu0 0
    %746 = vmatpush1.bf16.msra.mxu0 %v646
    %747 = vmatprep.subr.bf16.mxu0 0
    %748 = vmatpush1.bf16.msra.mxu0 %v645
    %749 = vmatprep.subr.bf16.mxu0 0
    %750 = vmatpush2.bf16.msra.mxu0 %v660
    %751 = vmatprep.subr.bf16.mxu0 0
    %752 = vmatpush2.bf16.msra.mxu0 %v659
    %753 = vmatprep.subr.bf16.mxu0 0
    %754 = vmatpush2.bf16.msra.mxu0 %v658
    %755 = vmatprep.subr.bf16.mxu0 0
    %756 = vmatpush2.bf16.msra.mxu0 %v657
    %757 = vmatprep.subr.bf16.mxu0 0
    %758 = vmatpush2.bf16.msra.mxu0 %v656
    %759 = vmatprep.subr.bf16.mxu0 0
    %760 = vmatpush2.bf16.msra.mxu0 %v655
    %761 = vmatprep.subr.bf16.mxu0 0
    %762 = vmatpush2.bf16.msra.mxu0 %v654
    %763 = vmatprep.subr.bf16.mxu0 0
    %764 = vmatpush2.bf16.msra.mxu0 %v653
    %765 = vmatprep.mubr.bf16.mxu0 %v496
    %766 = vmatmul.mubr.bf16.gmra.mxu0 %v495
    %v767 = vpop.f32.mrf.mxu0
    %v768 = vadd.f32 %v728, %v767
    %v769 = vpop.f32.mrf.mxu0
    %v770 = vpop.f32.mrf.mxu0
    %v771 = vpop.f32.mrf.mxu0
    %772 = vdwg.mxu0
    %v781 = vunpack.c.l.b16 %v328
    %v782 = vunpack.c.l.b16 %v329
    %v783 = vunpack.c.l.b16 %v330
    %v784 = vunpack.c.l.b16 %v331
    %v785 = vunpack.c.l.b16 %v332
    %v786 = vunpack.c.l.b16 %v333
    %v787 = vunpack.c.l.b16 %v334
    %v788 = vunpack.c.l.b16 %v335
    %v789 = vsel %vm488, %v785, %v781
    %v790 = vsel %vm488, %v786, %v782
    %v791 = vsel %vm488, %v787, %v783
    %v792 = vsel %vm488, %v788, %v784
    %v793 = vpack.c.b16 %v789, %v789
    %v794 = vpack.c.b16 %v790, %v790
    %v795 = vpack.c.b16 %v791, %v791
    %v796 = vpack.c.b16 %v792, %v792
    %v865 = vunpack.c.l.b16 %v336
    %v866 = vunpack.c.l.b16 %v337
    %v867 = vunpack.c.l.b16 %v338
    %v868 = vunpack.c.l.b16 %v339
    %v869 = vunpack.c.l.b16 %v340
    %v870 = vunpack.c.l.b16 %v341
    %v871 = vunpack.c.l.b16 %v342
    %v872 = vunpack.c.l.b16 %v343
    %v873 = vunpack.c.l.b16 %v344
    %v874 = vunpack.c.l.b16 %v345
    %v875 = vunpack.c.l.b16 %v346
    %v876 = vunpack.c.l.b16 %v347
    %v877 = vunpack.c.l.b16 %v348
    %v878 = vunpack.c.l.b16 %v349
    %v879 = vunpack.c.l.b16 %v350
    %v880 = vunpack.c.l.b16 %v351
    %v881 = vunpack.c.l.b16 %v352
    %v882 = vunpack.c.l.b16 %v353
    %v883 = vunpack.c.l.b16 %v354
    %v884 = vunpack.c.l.b16 %v355
    %v885 = vunpack.c.l.b16 %v356
    %v886 = vunpack.c.l.b16 %v357
    %v887 = vunpack.c.l.b16 %v358
    %v888 = vunpack.c.l.b16 %v359
    %v889 = vunpack.c.l.b16 %v360
    %v890 = vunpack.c.l.b16 %v361
    %v891 = vunpack.c.l.b16 %v362
    %v892 = vunpack.c.l.b16 %v363
    %v893 = vunpack.c.l.b16 %v364
    %v894 = vunpack.c.l.b16 %v365
    %v895 = vunpack.c.l.b16 %v366
    %v896 = vunpack.c.l.b16 %v367
    %v897 = vunpack.c.l.b16 %v368
    %v898 = vunpack.c.l.b16 %v369
    %v899 = vunpack.c.l.b16 %v370
    %v900 = vunpack.c.l.b16 %v371
    %v901 = vunpack.c.l.b16 %v372
    %v902 = vunpack.c.l.b16 %v373
    %v903 = vunpack.c.l.b16 %v374
    %v904 = vunpack.c.l.b16 %v375
    %v905 = vunpack.c.l.b16 %v376
    %v906 = vunpack.c.l.b16 %v377
    %v907 = vunpack.c.l.b16 %v378
    %v908 = vunpack.c.l.b16 %v379
    %v909 = vunpack.c.l.b16 %v380
    %v910 = vunpack.c.l.b16 %v381
    %v911 = vunpack.c.l.b16 %v382
    %v912 = vunpack.c.l.b16 %v383
    %v913 = vunpack.c.l.b16 %v384
    %v914 = vunpack.c.l.b16 %v385
    %v915 = vunpack.c.l.b16 %v386
    %v916 = vunpack.c.l.b16 %v387
    %v917 = vunpack.c.l.b16 %v388
    %v918 = vunpack.c.l.b16 %v389
    %v919 = vunpack.c.l.b16 %v390
    %v920 = vunpack.c.l.b16 %v391
    %v921 = vunpack.c.l.b16 %v392
    %v922 = vunpack.c.l.b16 %v393
    %v923 = vunpack.c.l.b16 %v394
    %v924 = vunpack.c.l.b16 %v395
    %v925 = vunpack.c.l.b16 %v396
    %v926 = vunpack.c.l.b16 %v397
    %v927 = vunpack.c.l.b16 %v398
    %v928 = vunpack.c.l.b16 %v399
    %v929 = vpack.c.b16 %v866, %v865
    %v930 = vpack.c.b16 %v868, %v867
    %v931 = vpack.c.b16 %v870, %v869
    %v932 = vpack.c.b16 %v872, %v871
    %v933 = vpack.c.b16 %v874, %v873
    %v934 = vpack.c.b16 %v876, %v875
    %v935 = vpack.c.b16 %v878, %v877
    %v936 = vpack.c.b16 %v880, %v879
    %v937 = vpack.c.b16 %v882, %v881
    %v938 = vpack.c.b16 %v884, %v883
    %v939 = vpack.c.b16 %v886, %v885
    %v940 = vpack.c.b16 %v888, %v887
    %v941 = vpack.c.b16 %v890, %v889
    %v942 = vpack.c.b16 %v892, %v891
    %v943 = vpack.c.b16 %v894, %v893
    %v944 = vpack.c.b16 %v896, %v895
    %v945 = vpack.c.b16 %v898, %v897
    %v946 = vpack.c.b16 %v900, %v899
    %v947 = vpack.c.b16 %v902, %v901
    %v948 = vpack.c.b16 %v904, %v903
    %v949 = vpack.c.b16 %v906, %v905
    %v950 = vpack.c.b16 %v908, %v907
    %v951 = vpack.c.b16 %v910, %v909
    %v952 = vpack.c.b16 %v912, %v911
    %v953 = vpack.c.b16 %v914, %v913
    %v954 = vpack.c.b16 %v916, %v915
    %v955 = vpack.c.b16 %v918, %v917
    %v956 = vpack.c.b16 %v920, %v919
    %v957 = vpack.c.b16 %v922, %v921
    %v958 = vpack.c.b16 %v924, %v923
    %v959 = vpack.c.b16 %v926, %v925
    %v960 = vpack.c.b16 %v928, %v927
    %993 = vmatprep.subr.bf16.mxu0 0
    %994 = vmatpush1.bf16.msra.mxu0 %v936
    %995 = vmatprep.subr.bf16.mxu0 0
    %996 = vmatpush1.bf16.msra.mxu0 %v935
    %997 = vmatprep.subr.bf16.mxu0 0
    %998 = vmatpush1.bf16.msra.mxu0 %v934
    %999 = vmatprep.subr.bf16.mxu0 0
    %1000 = vmatpush1.bf16.msra.mxu0 %v933
    %1001 = vmatprep.subr.bf16.mxu0 0
    %1002 = vmatpush1.bf16.msra.mxu0 %v932
    %1003 = vmatprep.subr.bf16.mxu0 0
    %1004 = vmatpush1.bf16.msra.mxu0 %v931
    %1005 = vmatprep.subr.bf16.mxu0 0
    %1006 = vmatpush1.bf16.msra.mxu0 %v930
    %1007 = vmatprep.subr.bf16.mxu0 0
    %1008 = vmatpush1.bf16.msra.mxu0 %v929
    %1009 = vmatprep.subr.bf16.mxu0 0
    %1010 = vmatpush2.bf16.msra.mxu0 %v944
    %1011 = vmatprep.subr.bf16.mxu0 0
    %1012 = vmatpush2.bf16.msra.mxu0 %v943
    %1013 = vmatprep.subr.bf16.mxu0 0
    %1014 = vmatpush2.bf16.msra.mxu0 %v942
    %1015 = vmatprep.subr.bf16.mxu0 0
    %1016 = vmatpush2.bf16.msra.mxu0 %v941
    %1017 = vmatprep.subr.bf16.mxu0 0
    %1018 = vmatpush2.bf16.msra.mxu0 %v940
    %1019 = vmatprep.subr.bf16.mxu0 0
    %1020 = vmatpush2.bf16.msra.mxu0 %v939
    %1021 = vmatprep.subr.bf16.mxu0 0
    %1022 = vmatpush2.bf16.msra.mxu0 %v938
    %1023 = vmatprep.subr.bf16.mxu0 0
    %1024 = vmatpush2.bf16.msra.mxu0 %v937
    %1025 = vmatprep.mubr.bf16.mxu0 %v794
    %1026 = vmatmul.mubr.bf16.gmra.mxu0 %v793
    %v1027 = vpop.f32.mrf.mxu0
    %v1028 = vadd.f32 %v768, %v1027
    %v1029 = vpop.f32.mrf.mxu0
    %v1030 = vpop.f32.mrf.mxu0
    %v1031 = vpop.f32.mrf.mxu0
    %1032 = vdwg.mxu0
    %1033 = vmatprep.subr.bf16.mxu0 0
    %1034 = vmatpush1.bf16.msra.mxu0 %v952
    %1035 = vmatprep.subr.bf16.mxu0 0
    %1036 = vmatpush1.bf16.msra.mxu0 %v951
    %1037 = vmatprep.subr.bf16.mxu0 0
    %1038 = vmatpush1.bf16.msra.mxu0 %v950
    %1039 = vmatprep.subr.bf16.mxu0 0
    %1040 = vmatpush1.bf16.msra.mxu0 %v949
    %1041 = vmatprep.subr.bf16.mxu0 0
    %1042 = vmatpush1.bf16.msra.mxu0 %v948
    %1043 = vmatprep.subr.bf16.mxu0 0
    %1044 = vmatpush1.bf16.msra.mxu0 %v947
    %1045 = vmatprep.subr.bf16.mxu0 0
    %1046 = vmatpush1.bf16.msra.mxu0 %v946
    %1047 = vmatprep.subr.bf16.mxu0 0
    %1048 = vmatpush1.bf16.msra.mxu0 %v945
    %1049 = vmatprep.subr.bf16.mxu0 0
    %1050 = vmatpush2.bf16.msra.mxu0 %v960
    %1051 = vmatprep.subr.bf16.mxu0 0
    %1052 = vmatpush2.bf16.msra.mxu0 %v959
    %1053 = vmatprep.subr.bf16.mxu0 0
    %1054 = vmatpush2.bf16.msra.mxu0 %v958
    %1055 = vmatprep.subr.bf16.mxu0 0
    %1056 = vmatpush2.bf16.msra.mxu0 %v957
    %1057 = vmatprep.subr.bf16.mxu0 0
    %1058 = vmatpush2.bf16.msra.mxu0 %v956
    %1059 = vmatprep.subr.bf16.mxu0 0
    %1060 = vmatpush2.bf16.msra.mxu0 %v955
    %1061 = vmatprep.subr.bf16.mxu0 0
    %1062 = vmatpush2.bf16.msra.mxu0 %v954
    %1063 = vmatprep.subr.bf16.mxu0 0
    %1064 = vmatpush2.bf16.msra.mxu0 %v953
    %1065 = vmatprep.mubr.bf16.mxu0 %v796
    %1066 = vmatmul.mubr.bf16.gmra.mxu0 %v795
    %v1067 = vpop.f32.mrf.mxu0
    %v1068 = vadd.f32 %v1028, %v1067
    %v1069 = vpop.f32.mrf.mxu0
    %v1070 = vpop.f32.mrf.mxu0
    %v1071 = vpop.f32.mrf.mxu0
    %1072 = vdwg.mxu0
    %v1073 = vld [vmem:[%s3] sm:$0x1]
    %v1075 = vlaneseq
    %v1076 = vshrl.u32 %v1075, 7
    %v1077 = vsub.s32 0, %v1076
    %v1078 = vrot.slane %v1073, %v1077
    %v1080 = vadd.f32 %v1068, %v1078
    %v1081 = vmax.f32 %v1080, 0.0
    %v1082 = vpack.c.bf16 %v1081, %v1081
    %v1083 = vld [vmem:[#allocation8] sm:$0xff]
    %v1084 = vld [vmem:[#allocation8 + $0x8] sm:$0xff]
    %v1085 = vld [vmem:[#allocation8 + $0x10] sm:$0xff]
    %v1086 = vld [vmem:[#allocation8 + $0x18] sm:$0xff]
    %v1087 = vld [vmem:[#allocation8 + $0x20] sm:$0xff]
    %v1088 = vld [vmem:[#allocation8 + $0x28] sm:$0xff]
    %v1089 = vld [vmem:[#allocation8 + $0x30] sm:$0xff]
    %v1090 = vld [vmem:[#allocation8 + $0x38] sm:$0xff]
    %v1091 = vld [vmem:[#allocation8 + $0x40] sm:$0xff]
    %v1092 = vld [vmem:[#allocation8 + $0x48] sm:$0xff]
    %v1093 = vld [vmem:[#allocation8 + $0x50] sm:$0xff]
    %v1094 = vld [vmem:[#allocation8 + $0x58] sm:$0xff]
    %v1095 = vld [vmem:[#allocation8 + $0x60] sm:$0xff]
    %v1096 = vld [vmem:[#allocation8 + $0x68] sm:$0xff]
    %v1097 = vld [vmem:[#allocation8 + $0x70] sm:$0xff]
    %v1098 = vld [vmem:[#allocation8 + $0x78] sm:$0xff]
    %v1099 = vld [vmem:[#allocation8 + $0x80] sm:$0xff]
    %v1100 = vld [vmem:[#allocation8 + $0x88] sm:$0xff]
    %v1101 = vld [vmem:[#allocation8 + $0x90] sm:$0xff]
    %v1102 = vld [vmem:[#allocation8 + $0x98] sm:$0xff]
    %v1103 = vld [vmem:[#allocation8 + $0xa0] sm:$0xff]
    %v1104 = vld [vmem:[#allocation8 + $0xa8] sm:$0xff]
    %v1105 = vld [vmem:[#allocation8 + $0xb0] sm:$0xff]
    %v1106 = vld [vmem:[#allocation8 + $0xb8] sm:$0xff]
    %v1107 = vld [vmem:[#allocation8 + $0xc0] sm:$0xff]
    %v1108 = vld [vmem:[#allocation8 + $0xc8] sm:$0xff]
    %v1109 = vld [vmem:[#allocation8 + $0xd0] sm:$0xff]
    %v1110 = vld [vmem:[#allocation8 + $0xd8] sm:$0xff]
    %v1111 = vld [vmem:[#allocation8 + $0xe0] sm:$0xff]
    %v1112 = vld [vmem:[#allocation8 + $0xe8] sm:$0xff]
    %v1113 = vld [vmem:[#allocation8 + $0xf0] sm:$0xff]
    %v1114 = vld [vmem:[#allocation8 + $0xf8] sm:$0xff]
    %v1115 = vld [vmem:[%s5] sm:$0xf]
    %v1117 = vlaneseq
    %v1118 = vshrl.u32 %v1117, 7
    %v1119 = vsub.s32 0, %v1118
    %v1120 = vrot.slane %v1115, %v1119
    %v1121 = vlaneseq
    %v1122 = vshrl.u32 %v1121, 7
    %v1123 = vsub.s32 1, %v1122
    %v1124 = vrot.slane %v1115, %v1123
    %v1125 = vlaneseq
    %v1126 = vshrl.u32 %v1125, 7
    %v1127 = vsub.s32 2, %v1126
    %v1128 = vrot.slane %v1115, %v1127
    %v1129 = vlaneseq
    %v1130 = vshrl.u32 %v1129, 7
    %v1131 = vsub.s32 3, %v1130
    %v1132 = vrot.slane %v1115, %v1131
    %v1169 = vunpack.c.l.b16 %v1083
    %v1170 = vunpack.c.h.b16 %v1083
    %v1171 = vunpack.c.l.b16 %v1084
    %v1172 = vunpack.c.h.b16 %v1084
    %v1173 = vunpack.c.l.b16 %v1085
    %v1174 = vunpack.c.h.b16 %v1085
    %v1175 = vunpack.c.l.b16 %v1086
    %v1176 = vunpack.c.h.b16 %v1086
    %v1177 = vunpack.c.l.b16 %v1087
    %v1178 = vunpack.c.h.b16 %v1087
    %v1179 = vunpack.c.l.b16 %v1088
    %v1180 = vunpack.c.h.b16 %v1088
    %v1181 = vunpack.c.l.b16 %v1089
    %v1182 = vunpack.c.h.b16 %v1089
    %v1183 = vunpack.c.l.b16 %v1090
    %v1184 = vunpack.c.h.b16 %v1090
    %v1185 = vunpack.c.l.b16 %v1091
    %v1186 = vunpack.c.h.b16 %v1091
    %v1187 = vunpack.c.l.b16 %v1092
    %v1188 = vunpack.c.h.b16 %v1092
    %v1189 = vunpack.c.l.b16 %v1093
    %v1190 = vunpack.c.h.b16 %v1093
    %v1191 = vunpack.c.l.b16 %v1094
    %v1192 = vunpack.c.h.b16 %v1094
    %v1193 = vunpack.c.l.b16 %v1095
    %v1194 = vunpack.c.h.b16 %v1095
    %v1195 = vunpack.c.l.b16 %v1096
    %v1196 = vunpack.c.h.b16 %v1096
    %v1197 = vunpack.c.l.b16 %v1097
    %v1198 = vunpack.c.h.b16 %v1097
    %v1199 = vunpack.c.l.b16 %v1098
    %v1200 = vunpack.c.h.b16 %v1098
    %v1201 = vunpack.c.l.b16 %v1099
    %v1202 = vunpack.c.h.b16 %v1099
    %v1203 = vunpack.c.l.b16 %v1100
    %v1204 = vunpack.c.h.b16 %v1100
    %v1205 = vunpack.c.l.b16 %v1101
    %v1206 = vunpack.c.h.b16 %v1101
    %v1207 = vunpack.c.l.b16 %v1102
    %v1208 = vunpack.c.h.b16 %v1102
    %v1209 = vunpack.c.l.b16 %v1103
    %v1210 = vunpack.c.h.b16 %v1103
    %v1211 = vunpack.c.l.b16 %v1104
    %v1212 = vunpack.c.h.b16 %v1104
    %v1213 = vunpack.c.l.b16 %v1105
    %v1214 = vunpack.c.h.b16 %v1105
    %v1215 = vunpack.c.l.b16 %v1106
    %v1216 = vunpack.c.h.b16 %v1106
    %v1217 = vunpack.c.l.b16 %v1107
    %v1218 = vunpack.c.h.b16 %v1107
    %v1219 = vunpack.c.l.b16 %v1108
    %v1220 = vunpack.c.h.b16 %v1108
    %v1221 = vunpack.c.l.b16 %v1109
    %v1222 = vunpack.c.h.b16 %v1109
    %v1223 = vunpack.c.l.b16 %v1110
    %v1224 = vunpack.c.h.b16 %v1110
    %v1225 = vunpack.c.l.b16 %v1111
    %v1226 = vunpack.c.h.b16 %v1111
    %v1227 = vunpack.c.l.b16 %v1112
    %v1228 = vunpack.c.h.b16 %v1112
    %v1229 = vunpack.c.l.b16 %v1113
    %v1230 = vunpack.c.h.b16 %v1113
    %v1231 = vunpack.c.l.b16 %v1114
    %v1232 = vunpack.c.h.b16 %v1114
    %v1233 = vpack.c.b16 %v1173, %v1169
    %v1234 = vpack.c.b16 %v1174, %v1170
    %v1235 = vpack.c.b16 %v1175, %v1171
    %v1236 = vpack.c.b16 %v1176, %v1172
    %v1237 = vpack.c.b16 %v1181, %v1177
    %v1238 = vpack.c.b16 %v1182, %v1178
    %v1239 = vpack.c.b16 %v1183, %v1179
    %v1240 = vpack.c.b16 %v1184, %v1180
    %v1241 = vpack.c.b16 %v1189, %v1185
    %v1242 = vpack.c.b16 %v1190, %v1186
    %v1243 = vpack.c.b16 %v1191, %v1187
    %v1244 = vpack.c.b16 %v1192, %v1188
    %v1245 = vpack.c.b16 %v1197, %v1193
    %v1246 = vpack.c.b16 %v1198, %v1194
    %v1247 = vpack.c.b16 %v1199, %v1195
    %v1248 = vpack.c.b16 %v1200, %v1196
    %v1249 = vpack.c.b16 %v1205, %v1201
    %v1250 = vpack.c.b16 %v1206, %v1202
    %v1251 = vpack.c.b16 %v1207, %v1203
    %v1252 = vpack.c.b16 %v1208, %v1204
    %v1253 = vpack.c.b16 %v1213, %v1209
    %v1254 = vpack.c.b16 %v1214, %v1210
    %v1255 = vpack.c.b16 %v1215, %v1211
    %v1256 = vpack.c.b16 %v1216, %v1212
    %v1257 = vpack.c.b16 %v1221, %v1217
    %v1258 = vpack.c.b16 %v1222, %v1218
    %v1259 = vpack.c.b16 %v1223, %v1219
    %v1260 = vpack.c.b16 %v1224, %v1220
    %v1261 = vpack.c.b16 %v1229, %v1225
    %v1262 = vpack.c.b16 %v1230, %v1226
    %v1263 = vpack.c.b16 %v1231, %v1227
    %v1264 = vpack.c.b16 %v1232, %v1228
    %1297 = vmatprep.subr.bf16.mxu0 %v1262
    %1298 = vmatpush1.bf16.msra.mxu0 %v1261
    %1299 = vmatprep.subr.bf16.mxu0 %v1258
    %1300 = vmatpush1.bf16.msra.mxu0 %v1257
    %1301 = vmatprep.subr.bf16.mxu0 %v1254
    %1302 = vmatpush1.bf16.msra.mxu0 %v1253
    %1303 = vmatprep.subr.bf16.mxu0 %v1250
    %1304 = vmatpush1.bf16.msra.mxu0 %v1249
    %1305 = vmatprep.subr.bf16.mxu0 %v1246
    %1306 = vmatpush1.bf16.msra.mxu0 %v1245
    %1307 = vmatprep.subr.bf16.mxu0 %v1242
    %1308 = vmatpush1.bf16.msra.mxu0 %v1241
    %1309 = vmatprep.subr.bf16.mxu0 %v1238
    %1310 = vmatpush1.bf16.msra.mxu0 %v1237
    %1311 = vmatprep.subr.bf16.mxu0 %v1234
    %1312 = vmatpush1.bf16.msra.mxu0 %v1233
    %1313 = vmatprep.subr.bf16.mxu0 0
    %1314 = vmatpush2.bf16.msra.mxu0 0
    %1315 = vmatprep.subr.bf16.mxu0 0
    %1316 = vmatpush2.bf16.msra.mxu0 0
    %1317 = vmatprep.subr.bf16.mxu0 0
    %1318 = vmatpush2.bf16.msra.mxu0 0
    %1319 = vmatprep.subr.bf16.mxu0 0
    %1320 = vmatpush2.bf16.msra.mxu0 0
    %1321 = vmatprep.subr.bf16.mxu0 0
    %1322 = vmatpush2.bf16.msra.mxu0 0
    %1323 = vmatprep.subr.bf16.mxu0 0
    %1324 = vmatpush2.bf16.msra.mxu0 0
    %1325 = vmatprep.subr.bf16.mxu0 0
    %1326 = vmatpush2.bf16.msra.mxu0 0
    %1327 = vmatprep.subr.bf16.mxu0 0
    %1328 = vmatpush2.bf16.msra.mxu0 0
    %1329 = vmatprep.mubr.bf16.mxu0 0
    %1330 = vmatmul.mubr.bf16.gmra.mxu0 %v1082
    %v1331 = vpop.f32.mrf.mxu0
    %v1332 = vadd.f32 %v1120, %v1331
    %v1333 = vpop.f32.mrf.mxu0
    %v1334 = vadd.f32 %v1124, %v1333
    %v1335 = vpop.f32.mrf.mxu0
    %v1336 = vpop.f32.mrf.mxu0
    %1337 = vdwg.mxu0
    %1338 = vmatprep.subr.bf16.mxu0 %v1264
    %1339 = vmatpush1.bf16.msra.mxu0 %v1263
    %1340 = vmatprep.subr.bf16.mxu0 %v1260
    %1341 = vmatpush1.bf16.msra.mxu0 %v1259
    %1342 = vmatprep.subr.bf16.mxu0 %v1256
    %1343 = vmatpush1.bf16.msra.mxu0 %v1255
    %1344 = vmatprep.subr.bf16.mxu0 %v1252
    %1345 = vmatpush1.bf16.msra.mxu0 %v1251
    %1346 = vmatprep.subr.bf16.mxu0 %v1248
    %1347 = vmatpush1.bf16.msra.mxu0 %v1247
    %1348 = vmatprep.subr.bf16.mxu0 %v1244
    %1349 = vmatpush1.bf16.msra.mxu0 %v1243
    %1350 = vmatprep.subr.bf16.mxu0 %v1240
    %1351 = vmatpush1.bf16.msra.mxu0 %v1239
    %1352 = vmatprep.subr.bf16.mxu0 %v1236
    %1353 = vmatpush1.bf16.msra.mxu0 %v1235
    %1354 = vmatprep.subr.bf16.mxu0 0
    %1355 = vmatpush2.bf16.msra.mxu0 0
    %1356 = vmatprep.subr.bf16.mxu0 0
    %1357 = vmatpush2.bf16.msra.mxu0 0
    %1358 = vmatprep.subr.bf16.mxu0 0
    %1359 = vmatpush2.bf16.msra.mxu0 0
    %1360 = vmatprep.subr.bf16.mxu0 0
    %1361 = vmatpush2.bf16.msra.mxu0 0
    %1362 = vmatprep.subr.bf16.mxu0 0
    %1363 = vmatpush2.bf16.msra.mxu0 0
    %1364 = vmatprep.subr.bf16.mxu0 0
    %1365 = vmatpush2.bf16.msra.mxu0 0
    %1366 = vmatprep.subr.bf16.mxu0 0
    %1367 = vmatpush2.bf16.msra.mxu0 0
    %1368 = vmatprep.subr.bf16.mxu0 0
    %1369 = vmatpush2.bf16.msra.mxu0 0
    %1370 = vmatprep.mubr.bf16.mxu0 0
    %1371 = vmatmul.mubr.bf16.gmra.mxu0 %v1082
    %v1372 = vpop.f32.mrf.mxu0
    %v1373 = vadd.f32 %v1128, %v1372
    %v1374 = vpop.f32.mrf.mxu0
    %v1375 = vadd.f32 %v1132, %v1374
    %v1376 = vpop.f32.mrf.mxu0
    %v1377 = vpop.f32.mrf.mxu0
    %1378 = vdwg.mxu0
    %v1379 = vmul.f32 %v1332, %v1332
    %v1380 = vmul.f32 %v1334, %v1334
    %v1381 = vmul.f32 %v1373, %v1373
    %v1382 = vmul.f32 %v1375, %v1375
    %vm1383 = vcmask 1041408
    %v1384 = vsel %vm1383, %v1379, 0.0
    %v1385 = vsel %vm1383, %v1380, 0.0
    %v1386 = vadd.f32 %v1384, %v1385
    %v1387 = vsel %vm1383, %v1381, 0.0
    %v1388 = vadd.f32 %v1386, %v1387
    %v1389 = vsel %vm1383, %v1382, 0.0
    %v1390 = vadd.f32 %v1388, %v1389
    %1391 = vadd.xlane.f32.xlu0 %v1390
    %v1392 = vpop.xlane.xlu0 %1391
    %v1393 = vmax.f32 %v1392, 1e-24
    %v1394 = vrsqrt.pop %v1393
    %v1395 = vmul.f32 %v1332, %v1394
    %v1396 = vmul.f32 %v1334, %v1394
    %v1397 = vmul.f32 %v1373, %v1394
    %v1398 = vmul.f32 %v1375, %v1394
    %v1399 = vpack.c.bf16 %v1395, %v1395
    %v1400 = vpack.c.bf16 %v1396, %v1396
    %v1401 = vpack.c.bf16 %v1397, %v1397
    %v1402 = vpack.c.bf16 %v1398, %v1398
    %v1403 = vld [vmem:[#allocation10] sm:$0xf]
    %v1404 = vld [vmem:[#allocation10 + $0x4] sm:$0xf]
    %v1405 = vld [vmem:[#allocation10 + $0x8] sm:$0xf]
    %v1406 = vld [vmem:[#allocation10 + $0xc] sm:$0xf]
    %v1407 = vld [vmem:[#allocation10 + $0x10] sm:$0xf]
    %v1408 = vld [vmem:[#allocation10 + $0x14] sm:$0xf]
    %v1409 = vld [vmem:[#allocation10 + $0x18] sm:$0xf]
    %v1410 = vld [vmem:[#allocation10 + $0x1c] sm:$0xf]
    %v1411 = vld [vmem:[#allocation10 + $0x20] sm:$0xf]
    %v1412 = vld [vmem:[#allocation10 + $0x24] sm:$0xf]
    %v1413 = vld [vmem:[#allocation10 + $0x28] sm:$0xf]
    %v1414 = vld [vmem:[#allocation10 + $0x2c] sm:$0xf]
    %v1415 = vld [vmem:[#allocation10 + $0x30] sm:$0xf]
    %v1416 = vld [vmem:[#allocation10 + $0x34] sm:$0xf]
    %v1417 = vld [vmem:[#allocation10 + $0x38] sm:$0xf]
    %v1418 = vld [vmem:[#allocation10 + $0x3c] sm:$0xf]
    %v1419 = vld [vmem:[#allocation10 + $0x40] sm:$0xf]
    %v1420 = vld [vmem:[#allocation10 + $0x44] sm:$0xf]
    %v1421 = vld [vmem:[#allocation10 + $0x48] sm:$0xf]
    %v1422 = vld [vmem:[#allocation10 + $0x4c] sm:$0xf]
    %v1423 = vld [vmem:[#allocation10 + $0x50] sm:$0xf]
    %v1424 = vld [vmem:[#allocation10 + $0x54] sm:$0xf]
    %v1425 = vld [vmem:[#allocation10 + $0x58] sm:$0xf]
    %v1426 = vld [vmem:[#allocation10 + $0x5c] sm:$0xf]
    %v1427 = vld [vmem:[#allocation10 + $0x60] sm:$0xf]
    %v1428 = vld [vmem:[#allocation10 + $0x64] sm:$0xf]
    %v1429 = vld [vmem:[#allocation10 + $0x68] sm:$0xf]
    %v1430 = vld [vmem:[#allocation10 + $0x6c] sm:$0xf]
    %v1431 = vld [vmem:[#allocation10 + $0x70] sm:$0xf]
    %v1432 = vld [vmem:[#allocation10 + $0x74] sm:$0xf]
    %v1433 = vld [vmem:[#allocation10 + $0x78] sm:$0xf]
    %v1434 = vld [vmem:[#allocation10 + $0x7c] sm:$0xf]
    %v1435 = vld [vmem:[#allocation10 + $0x80] sm:$0xf]
    %v1436 = vld [vmem:[#allocation10 + $0x84] sm:$0xf]
    %v1437 = vld [vmem:[#allocation10 + $0x88] sm:$0xf]
    %v1438 = vld [vmem:[#allocation10 + $0x8c] sm:$0xf]
    %v1439 = vld [vmem:[#allocation10 + $0x90] sm:$0xf]
    %v1440 = vld [vmem:[#allocation10 + $0x94] sm:$0xf]
    %v1441 = vld [vmem:[#allocation10 + $0x98] sm:$0xf]
    %v1442 = vld [vmem:[#allocation10 + $0x9c] sm:$0xf]
    %v1443 = vld [vmem:[#allocation10 + $0xa0] sm:$0xf]
    %v1444 = vld [vmem:[#allocation10 + $0xa4] sm:$0xf]
    %v1445 = vld [vmem:[#allocation10 + $0xa8] sm:$0xf]
    %v1446 = vld [vmem:[#allocation10 + $0xac] sm:$0xf]
    %v1447 = vld [vmem:[#allocation10 + $0xb0] sm:$0xf]
    %v1448 = vld [vmem:[#allocation10 + $0xb4] sm:$0xf]
    %v1449 = vld [vmem:[#allocation10 + $0xb8] sm:$0xf]
    %v1450 = vld [vmem:[#allocation10 + $0xbc] sm:$0xf]
    %v1451 = vld [vmem:[#allocation10 + $0xc0] sm:$0xf]
    %v1452 = vld [vmem:[#allocation10 + $0xc4] sm:$0xf]
    %v1453 = vld [vmem:[#allocation10 + $0xc8] sm:$0xf]
    %v1454 = vld [vmem:[#allocation10 + $0xcc] sm:$0xf]
    %v1455 = vld [vmem:[#allocation10 + $0xd0] sm:$0xf]
    %v1456 = vld [vmem:[#allocation10 + $0xd4] sm:$0xf]
    %v1457 = vld [vmem:[#allocation10 + $0xd8] sm:$0xf]
    %v1458 = vld [vmem:[#allocation10 + $0xdc] sm:$0xf]
    %v1459 = vld [vmem:[#allocation10 + $0xe0] sm:$0xf]
    %v1460 = vld [vmem:[#allocation10 + $0xe4] sm:$0xf]
    %v1461 = vld [vmem:[#allocation10 + $0xe8] sm:$0xf]
    %v1462 = vld [vmem:[#allocation10 + $0xec] sm:$0xf]
    %v1463 = vld [vmem:[#allocation10 + $0xf0] sm:$0xf]
    %v1464 = vld [vmem:[#allocation10 + $0xf4] sm:$0xf]
    %v1465 = vld [vmem:[#allocation10 + $0xf8] sm:$0xf]
    %v1466 = vld [vmem:[#allocation10 + $0xfc] sm:$0xf]
    %v1531 = vunpack.c.l.b16 %v1403
    %v1532 = vunpack.c.l.b16 %v1404
    %v1533 = vunpack.c.l.b16 %v1405
    %v1534 = vunpack.c.l.b16 %v1406
    %v1535 = vunpack.c.l.b16 %v1407
    %v1536 = vunpack.c.l.b16 %v1408
    %v1537 = vunpack.c.l.b16 %v1409
    %v1538 = vunpack.c.l.b16 %v1410
    %v1539 = vunpack.c.l.b16 %v1411
    %v1540 = vunpack.c.l.b16 %v1412
    %v1541 = vunpack.c.l.b16 %v1413
    %v1542 = vunpack.c.l.b16 %v1414
    %v1543 = vunpack.c.l.b16 %v1415
    %v1544 = vunpack.c.l.b16 %v1416
    %v1545 = vunpack.c.l.b16 %v1417
    %v1546 = vunpack.c.l.b16 %v1418
    %v1547 = vunpack.c.l.b16 %v1419
    %v1548 = vunpack.c.l.b16 %v1420
    %v1549 = vunpack.c.l.b16 %v1421
    %v1550 = vunpack.c.l.b16 %v1422
    %v1551 = vunpack.c.l.b16 %v1423
    %v1552 = vunpack.c.l.b16 %v1424
    %v1553 = vunpack.c.l.b16 %v1425
    %v1554 = vunpack.c.l.b16 %v1426
    %v1555 = vunpack.c.l.b16 %v1427
    %v1556 = vunpack.c.l.b16 %v1428
    %v1557 = vunpack.c.l.b16 %v1429
    %v1558 = vunpack.c.l.b16 %v1430
    %v1559 = vunpack.c.l.b16 %v1431
    %v1560 = vunpack.c.l.b16 %v1432
    %v1561 = vunpack.c.l.b16 %v1433
    %v1562 = vunpack.c.l.b16 %v1434
    %v1563 = vunpack.c.l.b16 %v1435
    %v1564 = vunpack.c.l.b16 %v1436
    %v1565 = vunpack.c.l.b16 %v1437
    %v1566 = vunpack.c.l.b16 %v1438
    %v1567 = vunpack.c.l.b16 %v1439
    %v1568 = vunpack.c.l.b16 %v1440
    %v1569 = vunpack.c.l.b16 %v1441
    %v1570 = vunpack.c.l.b16 %v1442
    %v1571 = vunpack.c.l.b16 %v1443
    %v1572 = vunpack.c.l.b16 %v1444
    %v1573 = vunpack.c.l.b16 %v1445
    %v1574 = vunpack.c.l.b16 %v1446
    %v1575 = vunpack.c.l.b16 %v1447
    %v1576 = vunpack.c.l.b16 %v1448
    %v1577 = vunpack.c.l.b16 %v1449
    %v1578 = vunpack.c.l.b16 %v1450
    %v1579 = vunpack.c.l.b16 %v1451
    %v1580 = vunpack.c.l.b16 %v1452
    %v1581 = vunpack.c.l.b16 %v1453
    %v1582 = vunpack.c.l.b16 %v1454
    %v1583 = vunpack.c.l.b16 %v1455
    %v1584 = vunpack.c.l.b16 %v1456
    %v1585 = vunpack.c.l.b16 %v1457
    %v1586 = vunpack.c.l.b16 %v1458
    %v1587 = vunpack.c.l.b16 %v1459
    %v1588 = vunpack.c.l.b16 %v1460
    %v1589 = vunpack.c.l.b16 %v1461
    %v1590 = vunpack.c.l.b16 %v1462
    %v1591 = vunpack.c.l.b16 %v1463
    %v1592 = vunpack.c.l.b16 %v1464
    %v1593 = vunpack.c.l.b16 %v1465
    %v1594 = vunpack.c.l.b16 %v1466
    %v1595 = vpack.c.b16 %v1532, %v1531
    %v1596 = vpack.c.b16 %v1534, %v1533
    %v1597 = vpack.c.b16 %v1536, %v1535
    %v1598 = vpack.c.b16 %v1538, %v1537
    %v1599 = vpack.c.b16 %v1540, %v1539
    %v1600 = vpack.c.b16 %v1542, %v1541
    %v1601 = vpack.c.b16 %v1544, %v1543
    %v1602 = vpack.c.b16 %v1546, %v1545
    %v1603 = vpack.c.b16 %v1548, %v1547
    %v1604 = vpack.c.b16 %v1550, %v1549
    %v1605 = vpack.c.b16 %v1552, %v1551
    %v1606 = vpack.c.b16 %v1554, %v1553
    %v1607 = vpack.c.b16 %v1556, %v1555
    %v1608 = vpack.c.b16 %v1558, %v1557
    %v1609 = vpack.c.b16 %v1560, %v1559
    %v1610 = vpack.c.b16 %v1562, %v1561
    %v1611 = vpack.c.b16 %v1564, %v1563
    %v1612 = vpack.c.b16 %v1566, %v1565
    %v1613 = vpack.c.b16 %v1568, %v1567
    %v1614 = vpack.c.b16 %v1570, %v1569
    %v1615 = vpack.c.b16 %v1572, %v1571
    %v1616 = vpack.c.b16 %v1574, %v1573
    %v1617 = vpack.c.b16 %v1576, %v1575
    %v1618 = vpack.c.b16 %v1578, %v1577
    %v1619 = vpack.c.b16 %v1580, %v1579
    %v1620 = vpack.c.b16 %v1582, %v1581
    %v1621 = vpack.c.b16 %v1584, %v1583
    %v1622 = vpack.c.b16 %v1586, %v1585
    %v1623 = vpack.c.b16 %v1588, %v1587
    %v1624 = vpack.c.b16 %v1590, %v1589
    %v1625 = vpack.c.b16 %v1592, %v1591
    %v1626 = vpack.c.b16 %v1594, %v1593
    %1659 = vmatprep.subr.bf16.mxu0 0
    %1660 = vmatpush1.bf16.msra.mxu0 %v1602
    %1661 = vmatprep.subr.bf16.mxu0 0
    %1662 = vmatpush1.bf16.msra.mxu0 %v1601
    %1663 = vmatprep.subr.bf16.mxu0 0
    %1664 = vmatpush1.bf16.msra.mxu0 %v1600
    %1665 = vmatprep.subr.bf16.mxu0 0
    %1666 = vmatpush1.bf16.msra.mxu0 %v1599
    %1667 = vmatprep.subr.bf16.mxu0 0
    %1668 = vmatpush1.bf16.msra.mxu0 %v1598
    %1669 = vmatprep.subr.bf16.mxu0 0
    %1670 = vmatpush1.bf16.msra.mxu0 %v1597
    %1671 = vmatprep.subr.bf16.mxu0 0
    %1672 = vmatpush1.bf16.msra.mxu0 %v1596
    %1673 = vmatprep.subr.bf16.mxu0 0
    %1674 = vmatpush1.bf16.msra.mxu0 %v1595
    %1675 = vmatprep.subr.bf16.mxu0 0
    %1676 = vmatpush2.bf16.msra.mxu0 %v1610
    %1677 = vmatprep.subr.bf16.mxu0 0
    %1678 = vmatpush2.bf16.msra.mxu0 %v1609
    %1679 = vmatprep.subr.bf16.mxu0 0
    %1680 = vmatpush2.bf16.msra.mxu0 %v1608
    %1681 = vmatprep.subr.bf16.mxu0 0
    %1682 = vmatpush2.bf16.msra.mxu0 %v1607
    %1683 = vmatprep.subr.bf16.mxu0 0
    %1684 = vmatpush2.bf16.msra.mxu0 %v1606
    %1685 = vmatprep.subr.bf16.mxu0 0
    %1686 = vmatpush2.bf16.msra.mxu0 %v1605
    %1687 = vmatprep.subr.bf16.mxu0 0
    %1688 = vmatpush2.bf16.msra.mxu0 %v1604
    %1689 = vmatprep.subr.bf16.mxu0 0
    %1690 = vmatpush2.bf16.msra.mxu0 %v1603
    %1691 = vmatprep.mubr.bf16.mxu0 %v1400
    %1692 = vmatmul.mubr.bf16.gmra.mxu0 %v1399
    %v1693 = vpop.f32.mrf.mxu0
    %v1694 = vadd.f32 0.0, %v1693
    %v1695 = vpop.f32.mrf.mxu0
    %v1696 = vpop.f32.mrf.mxu0
    %v1697 = vpop.f32.mrf.mxu0
    %1698 = vdwg.mxu0
    %1699 = vmatprep.subr.bf16.mxu0 0
    %1700 = vmatpush1.bf16.msra.mxu0 %v1618
    %1701 = vmatprep.subr.bf16.mxu0 0
    %1702 = vmatpush1.bf16.msra.mxu0 %v1617
    %1703 = vmatprep.subr.bf16.mxu0 0
    %1704 = vmatpush1.bf16.msra.mxu0 %v1616
    %1705 = vmatprep.subr.bf16.mxu0 0
    %1706 = vmatpush1.bf16.msra.mxu0 %v1615
    %1707 = vmatprep.subr.bf16.mxu0 0
    %1708 = vmatpush1.bf16.msra.mxu0 %v1614
    %1709 = vmatprep.subr.bf16.mxu0 0
    %1710 = vmatpush1.bf16.msra.mxu0 %v1613
    %1711 = vmatprep.subr.bf16.mxu0 0
    %1712 = vmatpush1.bf16.msra.mxu0 %v1612
    %1713 = vmatprep.subr.bf16.mxu0 0
    %1714 = vmatpush1.bf16.msra.mxu0 %v1611
    %1715 = vmatprep.subr.bf16.mxu0 0
    %1716 = vmatpush2.bf16.msra.mxu0 %v1626
    %1717 = vmatprep.subr.bf16.mxu0 0
    %1718 = vmatpush2.bf16.msra.mxu0 %v1625
    %1719 = vmatprep.subr.bf16.mxu0 0
    %1720 = vmatpush2.bf16.msra.mxu0 %v1624
    %1721 = vmatprep.subr.bf16.mxu0 0
    %1722 = vmatpush2.bf16.msra.mxu0 %v1623
    %1723 = vmatprep.subr.bf16.mxu0 0
    %1724 = vmatpush2.bf16.msra.mxu0 %v1622
    %1725 = vmatprep.subr.bf16.mxu0 0
    %1726 = vmatpush2.bf16.msra.mxu0 %v1621
    %1727 = vmatprep.subr.bf16.mxu0 0
    %1728 = vmatpush2.bf16.msra.mxu0 %v1620
    %1729 = vmatprep.subr.bf16.mxu0 0
    %1730 = vmatpush2.bf16.msra.mxu0 %v1619
    %1731 = vmatprep.mubr.bf16.mxu0 %v1402
    %1732 = vmatmul.mubr.bf16.gmra.mxu0 %v1401
    %v1733 = vpop.f32.mrf.mxu0
    %v1734 = vadd.f32 %v1694, %v1733
    %v1735 = vpop.f32.mrf.mxu0
    %v1736 = vpop.f32.mrf.mxu0
    %v1737 = vpop.f32.mrf.mxu0
    %1738 = vdwg.mxu0
    %1739 = vst [vmem:[#allocation11] sm:$0x3] %v1734
    // Predicated region
    $region50: #{tpu_custom_call.1} parent=1 // pred_check
      _
    $region51: #{tpu_custom_call.1} parent=1 // pred_check_branch
      %1741 = sbr.rel (0) target = $region53
    $region52: #{tpu_custom_call.1} parent=1 // pred_region
      %s1743 = ssub.s32 32, 32
      %1744 = vsyncadd [#allocation4], %s1743
      %s1746 = sshll.u32 [#allocation11], 4
      %s1747 = int_to_ptr.vmem [resolvable:$true] %s1746
      %1749 = dma.vmem_to_hbm [thread:$0]  %s1747, 32, %s7, [#allocation4]
    $region53: #{tpu_custom_call.1} parent=1 // pred_fallthru
      _
    // Predicated region
    $region54: #{tpu_custom_call.1} parent=1 // pred_check
      _
    $region55: #{tpu_custom_call.1} parent=1 // pred_check_branch
      %1751 = sbr.rel (0) target = $region57
    $region56: #{tpu_custom_call.1} parent=1 // pred_region
      %1752 = dma.done [#allocation4], 32
    $region57: #{tpu_custom_call.1} parent=1 // pred_fallthru
      _
    %1753 = vsyncpa [#allocation3], 1
    %1754 = vsyncpa [#allocation6], 1
    %1755 = vsyncpa [#allocation9], 1
    %1756 = vsyncpa [#allocation4], 1

</llo_original>
